<compile_context>
chip_gen: v7x
topology: tpu7x:2x2x1
jax: 0.10.0
libtpu: 0.0.40
codegen_flags: <defaults>
</compile_context>

<pallas_src>
import jax
import jax.numpy as jnp
from jax.experimental import pallas as pl
from jax.experimental.pallas import tpu as pltpu


# ----------------------------------------------------------------------------
# Fused kernel: (Conv1d 1x1 + PReLU) x 2 on one [Cin, TN] spatial tile.
# ----------------------------------------------------------------------------
def _convblock_kernel(x_ref, w1_ref, w2_ref, side_ref, o_ref):
    # x_ref   : [1, Cin, TN]   input tile (channels-first, N on the lane axis)
    # w1_ref  : [Cout, Cin]
    # w2_ref  : [Cout, Cout]
    # side_ref: [Cout, 4]      columns = (b1, alpha1, b2, alpha2)
    # o_ref   : [1, Cout, TN]
    x = x_ref[0]
    side = side_ref[...]
    b1, a1 = side[:, 0:1], side[:, 1:2]
    b2, a2 = side[:, 2:3], side[:, 3:4]

    h = jnp.dot(w1_ref[...], x,
                preferred_element_type=jnp.float32,
                precision=jax.lax.Precision.HIGHEST) + b1
    h = jnp.where(h > 0, h, a1 * h)                      # PReLU (per-channel)

    y = jnp.dot(w2_ref[...], h,
                preferred_element_type=jnp.float32,
                precision=jax.lax.Precision.HIGHEST) + b2
    y = jnp.where(y > 0, y, a2 * y)                      # PReLU (per-channel)

    o_ref[0] = y.astype(o_ref.dtype)


# ----------------------------------------------------------------------------
# Tiling / VMEM sizing helpers.
# ----------------------------------------------------------------------------
def _vmem_capacity_bytes():
    """Physical VMEM of the current generation; assume v7x (64 MiB) if unknown."""
    try:
        cap = getattr(pltpu.get_tpu_info(), "vmem_capacity_bytes", None)
        if cap:
            return int(cap)
    except Exception:
        pass
    return 64 * 1024 * 1024


def _pick_tile_n(N, Cin, Cout, B, bytes_per_elem, stream_budget):
    """Largest lane-dense TN whose double-buffered streamed tiles fit the budget."""
    # per-step streamed VMEM ~ 2 * (Cin + Cout) * TN * bytes  (x + out, 2 bufs each)
    max_tn = max(128, stream_budget // (2 * (Cin + Cout) * bytes_per_elem))
    tn = 128
    for cand in (32768, 16384, 8192, 4096, 2048, 1024, 512, 256, 128):
        if cand <= max_tn:
            tn = cand
            break
    if tn >= N:
        # One full-extent block on the N axis (always legal, even if N % 128 != 0).
        return N
    # Megacore / pipelining guard: keep >= ~8 grid steps when possible, but
    # never shrink below 512 lanes (step overhead would dominate again).
    while tn > 512 and B * pl.cdiv(N, tn) < 8:
        tn //= 2
    return tn


# ----------------------------------------------------------------------------
# Wrapper.
# ----------------------------------------------------------------------------
def conv_block(x, params):
    """x: [B, Cin, N] -> [B, Cout, N] (PyTorch Conv1d / PReLU convention)."""
    B, Cin, N = x.shape
    Cout = params["w1"].shape[0]

    vmem_cap = _vmem_capacity_bytes()
    # Headroom under the physical capacity: ~48 MiB on v7x, ~96 MiB on v5e/v6e.
    vmem_limit = min(int(vmem_cap * 3 // 4), 112 * 1024 * 1024)
    bpe = jnp.dtype(x.dtype).itemsize
    TN = _pick_tile_n(N, Cin, Cout, B, bpe, stream_budget=vmem_limit // 2)
    grid = (B, pl.cdiv(N, TN))   # partial last N-tile handled by Pallas

    # Pack bias / PReLU alpha of both layers into one resident side array.
    side = jnp.concatenate(
        [params["b1"], params["a1"], params["b2"], params["a2"]], axis=1)

    def resident(shape):
        # Constant index_map -> stays in VMEM across all grid steps.
        return pl.BlockSpec(shape, lambda b, n: (0, 0))

    # TODO(synk): if the surrounding model tolerates bf16 activations, stream
    # x / out as bf16 (keep f32 accumulation) for ~2x on this HBM-bound kernel.
    return pl.pallas_call(
        _convblock_kernel,
        out_shape=jax.ShapeDtypeStruct((B, Cout, N), x.dtype),
        grid=grid,
        in_specs=[
            pl.BlockSpec((1, Cin, TN), lambda b, n: (b, 0, n)),   # x tile
            resident((Cout, Cin)),    # w1
            resident((Cout, Cout)),   # w2
            resident((Cout, 4)),      # (b1, a1, b2, a2)
        ],
        out_specs=pl.BlockSpec((1, Cout, TN), lambda b, n: (b, 0, n)),
        compiler_params=pltpu.CompilerParams(
            dimension_semantics=("parallel", "parallel"),
            vmem_limit_bytes=vmem_limit,
        ),
    )(x, params["w1"], params["w2"], side)
    # Note: implements the module's default depths=2; deeper blocks would chain
    # additional (w, b, alpha) triples through the same fused kernel.


# ----------------------------------------------------------------------------
# Deterministic example run + pure-JAX reference check.
# ----------------------------------------------------------------------------
if __name__ == "__main__":
    B, in_dim, N = 2, 4, 16
    out_dim = 32

    key = jax.random.PRNGKey(0)
    ks = jax.random.split(key, 8)

    x = jax.random.normal(ks[0], (B, in_dim, N), jnp.float32)

    # Conv1d weights stored as [Cout, Cin]; PReLU alphas per-channel [Cout, 1]
    # (PyTorch init is 0.25; perturb a little to exercise the per-channel path).
    params = dict(
        w1=0.2 * jax.random.normal(ks[1], (out_dim, in_dim), jnp.float32),
        b1=0.05 * jax.random.normal(ks[2], (out_dim, 1), jnp.float32),
        a1=0.25 * jnp.ones((out_dim, 1), jnp.float32)
           + 0.05 * jax.random.normal(ks[3], (out_dim, 1), jnp.float32),
        w2=0.2 * jax.random.normal(ks[4], (out_dim, out_dim), jnp.float32),
        b2=0.05 * jax.random.normal(ks[5], (out_dim, 1), jnp.float32),
        a2=0.25 * jnp.ones((out_dim, 1), jnp.float32)
           + 0.05 * jax.random.normal(ks[6], (out_dim, 1), jnp.float32),
    )

    out = conv_block(x, params)
    jax.block_until_ready(out)

    # Pure-JAX reference of the same fused forward pass.
    def ref(x, p):
        h = jnp.einsum("oc,bcn->bon", p["w1"], x,
                       precision=jax.lax.Precision.HIGHEST) + p["b1"][None]
        h = jnp.where(h > 0, h, p["a1"][None] * h)
        y = jnp.einsum("oc,bcn->bon", p["w2"], h,
                       precision=jax.lax.Precision.HIGHEST) + p["b2"][None]
        return jnp.where(y > 0, y, p["a2"][None] * y)

    expected = ref(x, params)

    assert out.shape == (B, out_dim, N)
    assert bool(jnp.all(jnp.isfinite(out)))
    assert bool(jnp.allclose(out, expected, rtol=1e-4, atol=1e-4))
    print("KERNEL_OK")
</pallas_src>

<mosaic_0001>
module attributes {stable_mosaic.version = 11 : i64} {
  func.func @_convblock_kernel(%arg0: i32, %arg1: i32, %arg2: memref<1x4x16xf32, #tpu.memory_space<vmem>>, %arg3: memref<32x4xf32, #tpu.memory_space<vmem>>, %arg4: memref<32x32xf32, #tpu.memory_space<vmem>>, %arg5: memref<32x4xf32, #tpu.memory_space<vmem>>, %arg6: memref<1x32x16xf32, #tpu.memory_space<vmem>>) attributes {dimension_semantics = [#tpu.dimension_semantics<parallel>, #tpu.dimension_semantics<parallel>], iteration_bounds = array<i64: 2, 1>, scalar_prefetch = 0 : i64, scratch_operands = 0 : i64, tpu.core_type = #tpu.core_type<tc>, window_params = [{transform_indices = @transform_0, window_bounds = array<i64: 1, 4, 16>}, {pipeline_mode = #tpu.pipeline_mode<synchronous>, transform_indices = @transform_1, window_bounds = array<i64: 32, 4>}, {pipeline_mode = #tpu.pipeline_mode<synchronous>, transform_indices = @transform_2, window_bounds = array<i64: 32, 32>}, {pipeline_mode = #tpu.pipeline_mode<synchronous>, transform_indices = @transform_3, window_bounds = array<i64: 32, 4>}, {transform_indices = @transform_4, window_bounds = array<i64: 1, 32, 16>}]} {
    %c0 = arith.constant 0 : index
    %c0_0 = arith.constant 0 : index
    %c0_1 = arith.constant 0 : index
    %0 = vector.load %arg2[%c0, %c0_0, %c0_1] : memref<1x4x16xf32, #tpu.memory_space<vmem>>, vector<1x4x16xf32>
    %1 = vector.shape_cast %0 : vector<1x4x16xf32> to vector<4x16xf32>
    %c0_2 = arith.constant 0 : index
    %c0_3 = arith.constant 0 : index
    %2 = vector.load %arg5[%c0_2, %c0_3] : memref<32x4xf32, #tpu.memory_space<vmem>>, vector<32x4xf32>
    %3 = vector.extract_strided_slice %2 {offsets = [0, 0], sizes = [32, 1], strides = [1, 1]} : vector<32x4xf32> to vector<32x1xf32>
    %4 = vector.extract_strided_slice %2 {offsets = [0, 1], sizes = [32, 1], strides = [1, 1]} : vector<32x4xf32> to vector<32x1xf32>
    %5 = vector.extract_strided_slice %2 {offsets = [0, 2], sizes = [32, 1], strides = [1, 1]} : vector<32x4xf32> to vector<32x1xf32>
    %6 = vector.extract_strided_slice %2 {offsets = [0, 3], sizes = [32, 1], strides = [1, 1]} : vector<32x4xf32> to vector<32x1xf32>
    %c0_4 = arith.constant 0 : index
    %c0_5 = arith.constant 0 : index
    %7 = vector.load %arg3[%c0_4, %c0_5] : memref<32x4xf32, #tpu.memory_space<vmem>>, vector<32x4xf32>
    %cst = arith.constant dense<0.000000e+00> : vector<32x16xf32>
    %8 = tpu.matmul %7, %1, %cst {dimension_numbers = #tpu.dot_dimension_numbers<[1], [0], [0], [1], [0, 0, 1, 1], [], []>, precision = #tpu.contract_precision<fp32>} : vector<32x4xf32>, vector<4x16xf32>, vector<32x16xf32> -> vector<32x16xf32>
    %9 = vector.broadcast %3 : vector<32x1xf32> to vector<32x16xf32>
    %10 = arith.addf %8, %9 : vector<32x16xf32>
    %cst_6 = arith.constant 0.000000e+00 : f32
    %11 = vector.broadcast %cst_6 : f32 to vector<32x16xf32>
    %12 = arith.cmpf ogt, %10, %11 : vector<32x16xf32>
    %13 = vector.broadcast %4 : vector<32x1xf32> to vector<32x16xf32>
    %14 = arith.mulf %13, %10 : vector<32x16xf32>
    %15 = arith.select %12, %10, %14 : vector<32x16xi1>, vector<32x16xf32>
    %c0_7 = arith.constant 0 : index
    %c0_8 = arith.constant 0 : index
    %16 = vector.load %arg4[%c0_7, %c0_8] : memref<32x32xf32, #tpu.memory_space<vmem>>, vector<32x32xf32>
    %cst_9 = arith.constant dense<0.000000e+00> : vector<32x16xf32>
    %17 = tpu.matmul %16, %15, %cst_9 {dimension_numbers = #tpu.dot_dimension_numbers<[1], [0], [0], [1], [0, 0, 1, 1], [], []>, precision = #tpu.contract_precision<fp32>} : vector<32x32xf32>, vector<32x16xf32>, vector<32x16xf32> -> vector<32x16xf32>
    %18 = vector.broadcast %5 : vector<32x1xf32> to vector<32x16xf32>
    %19 = arith.addf %17, %18 : vector<32x16xf32>
    %cst_10 = arith.constant 0.000000e+00 : f32
    %20 = vector.broadcast %cst_10 : f32 to vector<32x16xf32>
    %21 = arith.cmpf ogt, %19, %20 : vector<32x16xf32>
    %22 = vector.broadcast %6 : vector<32x1xf32> to vector<32x16xf32>
    %23 = arith.mulf %22, %19 : vector<32x16xf32>
    %24 = arith.select %21, %19, %23 : vector<32x16xi1>, vector<32x16xf32>
    %c0_11 = arith.constant 0 : index
    %c0_12 = arith.constant 0 : index
    %c0_13 = arith.constant 0 : index
    %25 = vector.load %arg6[%c0_11, %c0_12, %c0_13] : memref<1x32x16xf32, #tpu.memory_space<vmem>>, vector<1x32x16xf32>
    %26 = vector.shape_cast %25 : vector<1x32x16xf32> to vector<32x16xf32>
    %27 = vector.shape_cast %24 : vector<32x16xf32> to vector<1x32x16xf32>
    tpu.vector_store %arg6[%c0_11, %c0_12, %c0_13], %27 {strides = array<i32>} : memref<1x32x16xf32, #tpu.memory_space<vmem>>, vector<1x32x16xf32>,
    return
  }
  func.func @transform_0(%arg0: i32, %arg1: i32) -> (i32, i32, i32) {
    %c0_i32 = arith.constant 0 : i32
    %c0_i32_0 = arith.constant 0 : i32
    return %arg0, %c0_i32, %arg1 : i32, i32, i32
  }
  func.func @transform_1(%arg0: i32, %arg1: i32) -> (i32, i32) {
    %c0_i32 = arith.constant 0 : i32
    %c0_i32_0 = arith.constant 0 : i32
    %c0_i32_1 = arith.constant 0 : i32
    return %c0_i32, %c0_i32_0 : i32, i32
  }
  func.func @transform_2(%arg0: i32, %arg1: i32) -> (i32, i32) {
    %c0_i32 = arith.constant 0 : i32
    %c0_i32_0 = arith.constant 0 : i32
    %c0_i32_1 = arith.constant 0 : i32
    return %c0_i32, %c0_i32_0 : i32, i32
  }
  func.func @transform_3(%arg0: i32, %arg1: i32) -> (i32, i32) {
    %c0_i32 = arith.constant 0 : i32
    %c0_i32_0 = arith.constant 0 : i32
    %c0_i32_1 = arith.constant 0 : i32
    return %c0_i32, %c0_i32_0 : i32, i32
  }
  func.func @transform_4(%arg0: i32, %arg1: i32) -> (i32, i32, i32) {
    %c0_i32 = arith.constant 0 : i32
    %c0_i32_0 = arith.constant 0 : i32
    return %arg0, %c0_i32, %arg1 : i32, i32, i32
  }
}

</mosaic_0001>

<llo_original>
// kernel: tpu_custom_call.1
$region0: #{tpu_custom_call.1}
  #allocation0 [shape = 'u32[]', space=smem, size = 0x4, offset = 0x4, fixed_abs, tag = 'smem constant byte address 0x4 - core index']
  #allocation1 [shape = 'u32[144,128]{1,0:T(1,128)}', space=vmem, size = 0x12000, scoped, tag = 'internal scratch']
  %s0 = inlined_call_operand.vmem [shape: f32[2,4,16], index: 0, kind: input, shape index: {}]
  %s1 = inlined_call_operand.vmem [shape: f32[32,4], index: 1, kind: input, shape index: {}]
  %s2 = inlined_call_operand.vmem [shape: f32[32,32], index: 2, kind: input, shape index: {}]
  %s3 = inlined_call_operand.vmem [shape: f32[32,4], index: 3, kind: input, shape index: {}]
  %s4 = inlined_call_operand.vmem [shape: f32[2,32,16], index: 4, kind: output, shape index: {}]
  %s5 = sld [smem:[#allocation0]]
  $region49: #{tpu_custom_call.1} parent=0
    _
  %s7 = ssub.s32 1, %s5
  %s8 = scalar_select 0, %s7, %s5
  loop: start=0, step=1, limit=4
  $region2: #{tpu_custom_call.1} parent=0 // loop_pre_header
    _
  $region3: #{tpu_custom_call.1} parent=0 // loop_header
    %s10 = sphi 0, %s14
    %p11 = scmp.ge.s32.totalorder %s10, 4
    %s17 = sphi 0, %s29
    %s18 = sphi 0, %s25
    %s19 = sphi 0, %s17
    %s20 = sphi 0, %s18
    %s21 = sphi 0, %s19
    %s22 = sphi 0, %s20
    %s34 = sphi 0, %s36
    %s37 = sphi 0, %s34
    %s38 = sphi 0, %s37
    %s54 = sphi 0, %s38
    %s58 = sphi 0, %s58
    %s60 = sphi 0, %s58
    %s61 = sphi 0, %s60
    %s75 = sphi 0, %s61
    %s79 = sphi 0, %s79
    %s81 = sphi 0, %s79
    %s82 = sphi 0, %s81
    %s96 = sphi 0, %s82
    %s100 = sphi 0, %s100
    %s102 = sphi 0, %s100
    %s103 = sphi 0, %s102
    %s117 = sphi 0, %s103
    %s125 = sphi 0, %s127
    %s128 = sphi 0, %s125
    %s129 = sphi 0, %s128
    %s145 = sphi 0, %s129
  $region4: #{tpu_custom_call.1} parent=0 // loop_header_branch
    %13 = sbr.rel (%p11) target = $region8
  $region5: #{tpu_custom_call.1} parent=0 // loop_body
    %s15 = ssub.s32 %s10, 1
    %s16 = ssub.s32 %s10, 2
    %s23 = sadd.s32 1, %s18
    %p24 = scmp.ge.s32.totalorder %s23, 1
    %s25 = scalar_select %p24, 0, %s23
    %s26 = sadd.s32 1, %s17
    %s27 = scalar_select %p24, %s26, %s17
    %p28 = scmp.ge.s32.totalorder %s27, 2
    %s29 = scalar_select %p28, 0, %s27
    %s30 = ssub.s32 %s17, %s29
    %s31 = ssub.s32 %s18, %s25
    %s32 = sor.u32 %s30, %s31
    %p33 = scmp.eq.s32.totalorder %s32, 0
    %s35 = sadd.s32 %s34, 1
    %s36 = scalar_select %p33, %s34, %s35
    %p39 = pneg %p33
    %p40 = scmp.eq.s32.totalorder %s10, 1
    %p41 = por %p39, %p40
    %p42 = scmp.ne.s32.totalorder %s34, %s37
    %p43 = scmp.eq.s32.totalorder %s10, 0
    %p44 = por %p42, %p43
    %p45 = scmp.ne.s32.totalorder %s34, %s37
    %p46 = scmp.eq.s32.totalorder %s15, 1
    %p47 = por %p45, %p46
    %p48 = scmp.ne.s32.totalorder %s37, %s38
    %p49 = scmp.eq.s32.totalorder %s15, 0
    %p50 = por %p48, %p49
    %p51 = scmp.ne.s32.totalorder %s37, %s38
    %p52 = scmp.eq.s32.totalorder %s16, 1
    %p53 = por %p51, %p52
    %p55 = scmp.ne.s32.totalorder %s38, %s54
    %p56 = scmp.eq.s32.totalorder %s16, 0
    %p57 = por %p55, %p56
    %s59 = sadd.s32 %s58, 1
    %p62 = scmp.eq.s32.totalorder %s10, 1
    %p63 = scmp.ne.s32.totalorder %s58, %s60
    %p64 = scmp.eq.s32.totalorder %s10, 0
    %p65 = por %p63, %p64
    %p66 = scmp.ne.s32.totalorder %s58, %s60
    %p67 = scmp.eq.s32.totalorder %s15, 1
    %p68 = por %p66, %p67
    %p69 = scmp.ne.s32.totalorder %s60, %s61
    %p70 = scmp.eq.s32.totalorder %s15, 0
    %p71 = por %p69, %p70
    %p72 = scmp.ne.s32.totalorder %s60, %s61
    %p73 = scmp.eq.s32.totalorder %s16, 1
    %p74 = por %p72, %p73
    %p76 = scmp.ne.s32.totalorder %s61, %s75
    %p77 = scmp.eq.s32.totalorder %s16, 0
    %p78 = por %p76, %p77
    %s80 = sadd.s32 %s79, 1
    %p83 = scmp.eq.s32.totalorder %s10, 1
    %p84 = scmp.ne.s32.totalorder %s79, %s81
    %p85 = scmp.eq.s32.totalorder %s10, 0
    %p86 = por %p84, %p85
    %p87 = scmp.ne.s32.totalorder %s79, %s81
    %p88 = scmp.eq.s32.totalorder %s15, 1
    %p89 = por %p87, %p88
    %p90 = scmp.ne.s32.totalorder %s81, %s82
    %p91 = scmp.eq.s32.totalorder %s15, 0
    %p92 = por %p90, %p91
    %p93 = scmp.ne.s32.totalorder %s81, %s82
    %p94 = scmp.eq.s32.totalorder %s16, 1
    %p95 = por %p93, %p94
    %p97 = scmp.ne.s32.totalorder %s82, %s96
    %p98 = scmp.eq.s32.totalorder %s16, 0
    %p99 = por %p97, %p98
    %s101 = sadd.s32 %s100, 1
    %p104 = scmp.eq.s32.totalorder %s10, 1
    %p105 = scmp.ne.s32.totalorder %s100, %s102
    %p106 = scmp.eq.s32.totalorder %s10, 0
    %p107 = por %p105, %p106
    %p108 = scmp.ne.s32.totalorder %s100, %s102
    %p109 = scmp.eq.s32.totalorder %s15, 1
    %p110 = por %p108, %p109
    %p111 = scmp.ne.s32.totalorder %s102, %s103
    %p112 = scmp.eq.s32.totalorder %s15, 0
    %p113 = por %p111, %p112
    %p114 = scmp.ne.s32.totalorder %s102, %s103
    %p115 = scmp.eq.s32.totalorder %s16, 1
    %p116 = por %p114, %p115
    %p118 = scmp.ne.s32.totalorder %s103, %s117
    %p119 = scmp.eq.s32.totalorder %s16, 0
    %p120 = por %p118, %p119
    %s121 = ssub.s32 %s17, %s29
    %s122 = ssub.s32 %s18, %s25
    %s123 = sor.u32 %s121, %s122
    %p124 = scmp.eq.s32.totalorder %s123, 0
    %s126 = sadd.s32 %s125, 1
    %s127 = scalar_select %p124, %s125, %s126
    %p130 = pneg %p124
    %p131 = scmp.eq.s32.totalorder %s10, 1
    %p132 = por %p130, %p131
    %p133 = scmp.ne.s32.totalorder %s125, %s128
    %p134 = scmp.eq.s32.totalorder %s10, 0
    %p135 = por %p133, %p134
    %p136 = scmp.ne.s32.totalorder %s125, %s128
    %p137 = scmp.eq.s32.totalorder %s15, 1
    %p138 = por %p136, %p137
    %p139 = scmp.ne.s32.totalorder %s128, %s129
    %p140 = scmp.eq.s32.totalorder %s15, 0
    %p141 = por %p139, %p140
    %p142 = scmp.ne.s32.totalorder %s128, %s129
    %p143 = scmp.eq.s32.totalorder %s16, 1
    %p144 = por %p142, %p143
    %p146 = scmp.ne.s32.totalorder %s129, %s145
    %p147 = scmp.eq.s32.totalorder %s16, 0
    %p148 = por %p146, %p147
    %p149 = scmp.le.s32.totalorder 1, %s10
    %p150 = scmp.lt.s32.totalorder %s10, 3
    %p151 = pnand %p149, %p150
    %p152 = pneg %p151
    // Predicated region
    $region9: #{tpu_custom_call.1} parent=5 // pred_check
      _
    $region10: #{tpu_custom_call.1} parent=5 // pred_check_branch
      %154 = sbr.rel (%p151) target = $region12
    $region11: #{tpu_custom_call.1} parent=5 // pred_region
      %s155 = ssub.s32 %s10, 1
      // Predicated region
      $region13: #{tpu_custom_call.1} parent=11 // pred_check
        %p156 = pneg %p71
      $region14: #{tpu_custom_call.1} parent=11 // pred_check_branch
        %158 = sbr.rel (%p156) target = $region16
      $region15: #{tpu_custom_call.1} parent=11 // pred_region
        _
      $region16: #{tpu_custom_call.1} parent=11 // pred_fallthru
        _
      // Predicated region
      $region17: #{tpu_custom_call.1} parent=11 // pred_check
        %p159 = pneg %p92
      $region18: #{tpu_custom_call.1} parent=11 // pred_check_branch
        %161 = sbr.rel (%p159) target = $region20
      $region19: #{tpu_custom_call.1} parent=11 // pred_region
        _
      $region20: #{tpu_custom_call.1} parent=11 // pred_fallthru
        _
      // Predicated region
      $region21: #{tpu_custom_call.1} parent=11 // pred_check
        %p162 = pneg %p113
      $region22: #{tpu_custom_call.1} parent=11 // pred_check_branch
        %164 = sbr.rel (%p162) target = $region24
      $region23: #{tpu_custom_call.1} parent=11 // pred_region
        _
      $region24: #{tpu_custom_call.1} parent=11 // pred_fallthru
        _
    $region12: #{tpu_custom_call.1} parent=5 // pred_fallthru
      _
    %p165 = scmp.lt.s32.totalorder %s10, 2
    // Predicated region
    $region25: #{tpu_custom_call.1} parent=5 // pred_check
      %p166 = pneg %p165
    $region26: #{tpu_custom_call.1} parent=5 // pred_check_branch
      %168 = sbr.rel (%p166) target = $region28
    $region27: #{tpu_custom_call.1} parent=5 // pred_region
      // Predicated region
      $region29: #{tpu_custom_call.1} parent=27 // pred_check
        %p169 = pneg %p44
      $region30: #{tpu_custom_call.1} parent=27 // pred_check_branch
        %171 = sbr.rel (%p169) target = $region32
      $region31: #{tpu_custom_call.1} parent=27 // pred_region
        %p172 = scmp.lt.s32.totalorder %s17, 1
        %s173 = scalar_select %p172, %s17, 1
        %p174 = scmp.lt.s32.totalorder %s18, 0
        %s175 = scalar_select %p174, %s18, 0
        %s176 = sadd.s32 %s175, %s173
        %s177 = smul.addr %s176, 4
        %s178 = scalar_lea.vmem %s0, %s177
      $region32: #{tpu_custom_call.1} parent=27 // pred_fallthru
        _
    $region28: #{tpu_custom_call.1} parent=5 // pred_fallthru
      _
    %p179 = scmp.le.s32.totalorder 1, %s10
    %p180 = scmp.lt.s32.totalorder %s10, 3
    %p181 = pnand %p179, %p180
    %p182 = pneg %p181
    // Predicated region
    $region33: #{tpu_custom_call.1} parent=5 // pred_check
      _
    $region34: #{tpu_custom_call.1} parent=5 // pred_check_branch
      %184 = sbr.rel (%p181) target = $region36
    $region35: #{tpu_custom_call.1} parent=5 // pred_region
      %s185 = ssub.s32 %s10, 1
      %p186 = scmp.lt.s32.totalorder %s19, 1
      %s187 = scalar_select %p186, %s19, 1
      %p188 = scmp.lt.s32.totalorder %s20, 0
      %s189 = scalar_select %p188, %s20, 0
      %s190 = sadd.s32 %s189, %s187
      %s191 = smul.addr %s190, 4
      %s192 = scalar_lea.vmem %s0, %s191
      %p193 = pneg %p50
      %p194 = pneg %p47
      %p195 = pneg %p71
      %p196 = pneg %p68
      %p197 = pneg %p92
      %p198 = pneg %p89
      %p199 = pneg %p113
      %p200 = pneg %p110
      %p201 = pneg %p141
      %p202 = pneg %p138
      %p203 = scmp.lt.s32.totalorder %s19, 1
      %s204 = scalar_select %p203, %s19, 1
      %p205 = scmp.lt.s32.totalorder %s20, 0
      %s206 = scalar_select %p205, %s20, 0
      %s207 = smul.addr %s204, 4
      %s208 = sadd.s32 %s206, %s207
      %s209 = smul.addr %s208, 8
      %s210 = scalar_lea.vmem %s4, %s209
      %p211 = scmp.lt.s32.totalorder %s19, 1
      %s212 = scalar_select %p211, %s19, 1
      %p213 = scmp.lt.s32.totalorder %s20, 0
      %s214 = scalar_select %p213, %s20, 0
      %s215 = sadd.s32 %s214, %s212
      %s216 = smul.addr %s215, 4
      %s217 = scalar_lea.vmem %s0, %s216
      %p218 = scmp.lt.s32.totalorder %s19, 1
      %s219 = scalar_select %p218, %s19, 1
      %p220 = scmp.lt.s32.totalorder %s20, 0
      %s221 = scalar_select %p220, %s20, 0
      %s222 = smul.addr %s219, 4
      %s223 = sadd.s32 %s221, %s222
      %s224 = smul.addr %s223, 8
      %s225 = scalar_lea.vmem %s4, %s224
      %v226 = vld [vmem:[%s217] sm:$0xf]
      %v227 = vld [vmem:[%s3] sm:$0xff]
      %v228 = vld [vmem:[%s3 + $0x8] sm:$0xff]
      %v229 = vld [vmem:[%s3 + $0x10] sm:$0xff]
      %v230 = vld [vmem:[%s3 + $0x18] sm:$0xff]
      %v231 = vld [vmem:[%s1] sm:$0xff]
      %v232 = vld [vmem:[%s1 + $0x8] sm:$0xff]
      %v233 = vld [vmem:[%s1 + $0x10] sm:$0xff]
      %v234 = vld [vmem:[%s1 + $0x18] sm:$0xff]
      %236 = vset.pattern.permute.xlu0 0
      %237 = vperm.xlu0 %236, %v227
      %v238 = vpop.permute.xlu0 %237
      %241 = vset.pattern.permute.xlu0 0
      %242 = vperm.xlu0 %241, %v228
      %v243 = vpop.permute.xlu0 %242
      %246 = vset.pattern.permute.xlu0 0
      %247 = vperm.xlu0 %246, %v229
      %v248 = vpop.permute.xlu0 %247
      %251 = vset.pattern.permute.xlu0 0
      %252 = vperm.xlu0 %251, %v230
      %v253 = vpop.permute.xlu0 %252
      %vm255 = vcmask 31744
      %v257 = vsel %vm255, %v231, 0
      %v260 = vsel %vm255, %v232, 0
      %v263 = vsel %vm255, %v233, 0
      %v266 = vsel %vm255, %v234, 0
      %vm268 = vcmask 1043456
      %v270 = vsel %vm268, %v226, 0
      %272 = vmatprep.subr.mxu0 0.0
      %v273 = vand.u32 %v270, 4294901760
      %274 = vmatpush1.msra.mxu0 %v273
      %275 = vmatprep.subr.mxu0 0.0
      %276 = vmatpush1.msra.mxu0 0.0
      %277 = vmatprep.subr.mxu0 0.0
      %278 = vmatpush1.msra.mxu0 0.0
      %279 = vmatprep.subr.mxu0 0.0
      %280 = vmatpush1.msra.mxu0 0.0
      %281 = vmatprep.subr.mxu0 0.0
      %282 = vmatpush1.msra.mxu0 0.0
      %283 = vmatprep.subr.mxu0 0.0
      %284 = vmatpush1.msra.mxu0 0.0
      %285 = vmatprep.subr.mxu0 0.0
      %286 = vmatpush1.msra.mxu0 0.0
      %287 = vmatprep.subr.mxu0 0.0
      %288 = vmatpush1.msra.mxu0 0.0
      %289 = vmatprep.subr.mxu0 0.0
      %290 = vmatpush1.msra.mxu0 0.0
      %291 = vmatprep.subr.mxu0 0.0
      %292 = vmatpush1.msra.mxu0 0.0
      %293 = vmatprep.subr.mxu0 0.0
      %294 = vmatpush1.msra.mxu0 0.0
      %295 = vmatprep.subr.mxu0 0.0
      %296 = vmatpush1.msra.mxu0 0.0
      %297 = vmatprep.subr.mxu0 0.0
      %298 = vmatpush1.msra.mxu0 0.0
      %299 = vmatprep.subr.mxu0 0.0
      %300 = vmatpush1.msra.mxu0 0.0
      %301 = vmatprep.subr.mxu0 0.0
      %302 = vmatpush1.msra.mxu0 0.0
      %303 = vmatprep.subr.mxu0 0.0
      %304 = vmatpush1.msra.mxu0 0.0
      %305 = vmatprep.subr.mxu0 0.0
      %306 = vmatpush1.msra.mxu0 0.0
      %307 = vmatprep.subr.mxu0 0.0
      %308 = vmatpush1.msra.mxu0 0.0
      %309 = vmatprep.subr.mxu0 0.0
      %310 = vmatpush1.msra.mxu0 0.0
      %311 = vmatprep.subr.mxu0 0.0
      %312 = vmatpush1.msra.mxu0 0.0
      %313 = vmatprep.subr.mxu0 0.0
      %314 = vmatpush1.msra.mxu0 0.0
      %315 = vmatprep.subr.mxu0 0.0
      %316 = vmatpush1.msra.mxu0 0.0
      %317 = vmatprep.subr.mxu0 0.0
      %318 = vmatpush1.msra.mxu0 0.0
      %319 = vmatprep.subr.mxu0 0.0
      %320 = vmatpush1.msra.mxu0 0.0
      %321 = vmatprep.subr.mxu0 0.0
      %322 = vmatpush1.msra.mxu0 0.0
      %323 = vmatprep.subr.mxu0 0.0
      %324 = vmatpush1.msra.mxu0 0.0
      %325 = vmatprep.subr.mxu0 0.0
      %326 = vmatpush1.msra.mxu0 0.0
      %327 = vmatprep.subr.mxu0 0.0
      %328 = vmatpush1.msra.mxu0 0.0
      %329 = vmatprep.subr.mxu0 0.0
      %330 = vmatpush1.msra.mxu0 0.0
      %331 = vmatprep.subr.mxu0 0.0
      %332 = vmatpush1.msra.mxu0 0.0
      %333 = vmatprep.subr.mxu0 0.0
      %334 = vmatpush1.msra.mxu0 0.0
      %335 = vmatprep.subr.mxu0 0.0
      %336 = vmatpush1.msra.mxu0 0.0
      %337 = vmatprep.mubr.f32.mxu0 0.0
      %v338 = vand.u32 %v257, 4294901760
      %v339 = vsub.f32 %v257, %v338
      %v340 = vand.u32 %v339, 4294901760
      %v341 = vsub.f32 %v339, %v340
      %v342 = vand.u32 %v341, 4294901760
      %343 = vmatmul.mubr.f32.gmra.mrb[0].mxu0 %v342
      %v344 = vpop.f32.mrb[0].mxu0
      %v345 = vadd.f32 %v238, %v344
      %v346 = vpop.f32.mrb[0].mxu0
      %347 = vmatprep.mubr.f32.mxu0 0.0
      %v348 = vand.u32 %v260, 4294901760
      %v349 = vsub.f32 %v260, %v348
      %v350 = vand.u32 %v349, 4294901760
      %v351 = vsub.f32 %v349, %v350
      %v352 = vand.u32 %v351, 4294901760
      %353 = vmatmul.mubr.f32.gmra.mrb[0].mxu0 %v352
      %v354 = vpop.f32.mrb[0].mxu0
      %v355 = vadd.f32 %v243, %v354
      %v356 = vpop.f32.mrb[0].mxu0
      %357 = vmatprep.mubr.f32.mxu0 0.0
      %v358 = vand.u32 %v263, 4294901760
      %v359 = vsub.f32 %v263, %v358
      %v360 = vand.u32 %v359, 4294901760
      %v361 = vsub.f32 %v359, %v360
      %v362 = vand.u32 %v361, 4294901760
      %363 = vmatmul.mubr.f32.gmra.mrb[0].mxu0 %v362
      %v364 = vpop.f32.mrb[0].mxu0
      %v365 = vadd.f32 %v248, %v364
      %v366 = vpop.f32.mrb[0].mxu0
      %367 = vmatprep.mubr.f32.mxu0 0.0
      %v368 = vand.u32 %v266, 4294901760
      %v369 = vsub.f32 %v266, %v368
      %v370 = vand.u32 %v369, 4294901760
      %v371 = vsub.f32 %v369, %v370
      %v372 = vand.u32 %v371, 4294901760
      %373 = vmatmul.mubr.f32.gmra.mrb[0].mxu0 %v372
      %v374 = vpop.f32.mrb[0].mxu0
      %v375 = vadd.f32 %v253, %v374
      %v376 = vpop.f32.mrb[0].mxu0
      %377 = vdwg.mxu0
      %378 = vmatprep.subr.mxu0 0.0
      %v379 = vand.u32 %v270, 4294901760
      %v380 = vsub.f32 %v270, %v379
      %v381 = vand.u32 %v380, 4294901760
      %v382 = vsub.f32 %v380, %v381
      %v383 = vand.u32 %v382, 4294901760
      %384 = vmatpush1.msra.mxu0 %v383
      %385 = vmatprep.subr.mxu0 0.0
      %386 = vmatpush1.msra.mxu0 0.0
      %387 = vmatprep.subr.mxu0 0.0
      %388 = vmatpush1.msra.mxu0 0.0
      %389 = vmatprep.subr.mxu0 0.0
      %390 = vmatpush1.msra.mxu0 0.0
      %391 = vmatprep.subr.mxu0 0.0
      %392 = vmatpush1.msra.mxu0 0.0
      %393 = vmatprep.subr.mxu0 0.0
      %394 = vmatpush1.msra.mxu0 0.0
      %395 = vmatprep.subr.mxu0 0.0
      %396 = vmatpush1.msra.mxu0 0.0
      %397 = vmatprep.subr.mxu0 0.0
      %398 = vmatpush1.msra.mxu0 0.0
      %399 = vmatprep.subr.mxu0 0.0
      %400 = vmatpush1.msra.mxu0 0.0
      %401 = vmatprep.subr.mxu0 0.0
      %402 = vmatpush1.msra.mxu0 0.0
      %403 = vmatprep.subr.mxu0 0.0
      %404 = vmatpush1.msra.mxu0 0.0
      %405 = vmatprep.subr.mxu0 0.0
      %406 = vmatpush1.msra.mxu0 0.0
      %407 = vmatprep.subr.mxu0 0.0
      %408 = vmatpush1.msra.mxu0 0.0
      %409 = vmatprep.subr.mxu0 0.0
      %410 = vmatpush1.msra.mxu0 0.0
      %411 = vmatprep.subr.mxu0 0.0
      %412 = vmatpush1.msra.mxu0 0.0
      %413 = vmatprep.subr.mxu0 0.0
      %414 = vmatpush1.msra.mxu0 0.0
      %415 = vmatprep.subr.mxu0 0.0
      %416 = vmatpush1.msra.mxu0 0.0
      %417 = vmatprep.subr.mxu0 0.0
      %418 = vmatpush1.msra.mxu0 0.0
      %419 = vmatprep.subr.mxu0 0.0
      %420 = vmatpush1.msra.mxu0 0.0
      %421 = vmatprep.subr.mxu0 0.0
      %422 = vmatpush1.msra.mxu0 0.0
      %423 = vmatprep.subr.mxu0 0.0
      %424 = vmatpush1.msra.mxu0 0.0
      %425 = vmatprep.subr.mxu0 0.0
      %426 = vmatpush1.msra.mxu0 0.0
      %427 = vmatprep.subr.mxu0 0.0
      %428 = vmatpush1.msra.mxu0 0.0
      %429 = vmatprep.subr.mxu0 0.0
      %430 = vmatpush1.msra.mxu0 0.0
      %431 = vmatprep.subr.mxu0 0.0
      %432 = vmatpush1.msra.mxu0 0.0
      %433 = vmatprep.subr.mxu0 0.0
      %434 = vmatpush1.msra.mxu0 0.0
      %435 = vmatprep.subr.mxu0 0.0
      %436 = vmatpush1.msra.mxu0 0.0
      %437 = vmatprep.subr.mxu0 0.0
      %438 = vmatpush1.msra.mxu0 0.0
      %439 = vmatprep.subr.mxu0 0.0
      %440 = vmatpush1.msra.mxu0 0.0
      %441 = vmatprep.subr.mxu0 0.0
      %442 = vmatpush1.msra.mxu0 0.0
      %443 = vmatprep.subr.mxu0 0.0
      %444 = vmatpush1.msra.mxu0 0.0
      %445 = vmatprep.subr.mxu0 0.0
      %446 = vmatpush1.msra.mxu0 0.0
      %447 = vmatprep.mubr.f32.mxu0 0.0
      %v448 = vand.u32 %v257, 4294901760
      %449 = vmatmul.mubr.f32.gmra.mrb[0].mxu0 %v448
      %v450 = vpop.f32.mrb[0].mxu0
      %v451 = vadd.f32 %v345, %v450
      %v452 = vpop.f32.mrb[0].mxu0
      %453 = vmatprep.mubr.f32.mxu0 0.0
      %v454 = vand.u32 %v260, 4294901760
      %455 = vmatmul.mubr.f32.gmra.mrb[0].mxu0 %v454
      %v456 = vpop.f32.mrb[0].mxu0
      %v457 = vadd.f32 %v355, %v456
      %v458 = vpop.f32.mrb[0].mxu0
      %459 = vmatprep.mubr.f32.mxu0 0.0
      %v460 = vand.u32 %v263, 4294901760
      %461 = vmatmul.mubr.f32.gmra.mrb[0].mxu0 %v460
      %v462 = vpop.f32.mrb[0].mxu0
      %v463 = vadd.f32 %v365, %v462
      %v464 = vpop.f32.mrb[0].mxu0
      %465 = vmatprep.mubr.f32.mxu0 0.0
      %v466 = vand.u32 %v266, 4294901760
      %467 = vmatmul.mubr.f32.gmra.mrb[0].mxu0 %v466
      %v468 = vpop.f32.mrb[0].mxu0
      %v469 = vadd.f32 %v375, %v468
      %v470 = vpop.f32.mrb[0].mxu0
      %471 = vdwg.mxu0
      %472 = vmatprep.subr.mxu0 0.0
      %v473 = vand.u32 %v270, 4294901760
      %v474 = vsub.f32 %v270, %v473
      %475 = vmatpush1.msra.mxu0 %v474
      %476 = vmatprep.subr.mxu0 0.0
      %477 = vmatpush1.msra.mxu0 0.0
      %478 = vmatprep.subr.mxu0 0.0
      %479 = vmatpush1.msra.mxu0 0.0
      %480 = vmatprep.subr.mxu0 0.0
      %481 = vmatpush1.msra.mxu0 0.0
      %482 = vmatprep.subr.mxu0 0.0
      %483 = vmatpush1.msra.mxu0 0.0
      %484 = vmatprep.subr.mxu0 0.0
      %485 = vmatpush1.msra.mxu0 0.0
      %486 = vmatprep.subr.mxu0 0.0
      %487 = vmatpush1.msra.mxu0 0.0
      %488 = vmatprep.subr.mxu0 0.0
      %489 = vmatpush1.msra.mxu0 0.0
      %490 = vmatprep.subr.mxu0 0.0
      %491 = vmatpush1.msra.mxu0 0.0
      %492 = vmatprep.subr.mxu0 0.0
      %493 = vmatpush1.msra.mxu0 0.0
      %494 = vmatprep.subr.mxu0 0.0
      %495 = vmatpush1.msra.mxu0 0.0
      %496 = vmatprep.subr.mxu0 0.0
      %497 = vmatpush1.msra.mxu0 0.0
      %498 = vmatprep.subr.mxu0 0.0
      %499 = vmatpush1.msra.mxu0 0.0
      %500 = vmatprep.subr.mxu0 0.0
      %501 = vmatpush1.msra.mxu0 0.0
      %502 = vmatprep.subr.mxu0 0.0
      %503 = vmatpush1.msra.mxu0 0.0
      %504 = vmatprep.subr.mxu0 0.0
      %505 = vmatpush1.msra.mxu0 0.0
      %506 = vmatprep.subr.mxu0 0.0
      %507 = vmatpush1.msra.mxu0 0.0
      %508 = vmatprep.subr.mxu0 0.0
      %509 = vmatpush1.msra.mxu0 0.0
      %510 = vmatprep.subr.mxu0 0.0
      %511 = vmatpush1.msra.mxu0 0.0
      %512 = vmatprep.subr.mxu0 0.0
      %513 = vmatpush1.msra.mxu0 0.0
      %514 = vmatprep.subr.mxu0 0.0
      %515 = vmatpush1.msra.mxu0 0.0
      %516 = vmatprep.subr.mxu0 0.0
      %517 = vmatpush1.msra.mxu0 0.0
      %518 = vmatprep.subr.mxu0 0.0
      %519 = vmatpush1.msra.mxu0 0.0
      %520 = vmatprep.subr.mxu0 0.0
      %521 = vmatpush1.msra.mxu0 0.0
      %522 = vmatprep.subr.mxu0 0.0
      %523 = vmatpush1.msra.mxu0 0.0
      %524 = vmatprep.subr.mxu0 0.0
      %525 = vmatpush1.msra.mxu0 0.0
      %526 = vmatprep.subr.mxu0 0.0
      %527 = vmatpush1.msra.mxu0 0.0
      %528 = vmatprep.subr.mxu0 0.0
      %529 = vmatpush1.msra.mxu0 0.0
      %530 = vmatprep.subr.mxu0 0.0
      %531 = vmatpush1.msra.mxu0 0.0
      %532 = vmatprep.subr.mxu0 0.0
      %533 = vmatpush1.msra.mxu0 0.0
      %534 = vmatprep.subr.mxu0 0.0
      %535 = vmatpush1.msra.mxu0 0.0
      %536 = vmatprep.subr.mxu0 0.0
      %537 = vmatpush1.msra.mxu0 0.0
      %538 = vmatprep.mubr.f32.mxu0 0.0
      %v539 = vand.u32 %v257, 4294901760
      %v540 = vsub.f32 %v257, %v539
      %541 = vmatmul.mubr.f32.gmra.mrb[0].mxu0 %v540
      %v542 = vpop.f32.mrb[0].mxu0
      %v543 = vadd.f32 %v451, %v542
      %v544 = vpop.f32.mrb[0].mxu0
      %545 = vmatprep.mubr.f32.mxu0 0.0
      %v546 = vand.u32 %v260, 4294901760
      %v547 = vsub.f32 %v260, %v546
      %548 = vmatmul.mubr.f32.gmra.mrb[0].mxu0 %v547
      %v549 = vpop.f32.mrb[0].mxu0
      %v550 = vadd.f32 %v457, %v549
      %v551 = vpop.f32.mrb[0].mxu0
      %552 = vmatprep.mubr.f32.mxu0 0.0
      %v553 = vand.u32 %v263, 4294901760
      %v554 = vsub.f32 %v263, %v553
      %555 = vmatmul.mubr.f32.gmra.mrb[0].mxu0 %v554
      %v556 = vpop.f32.mrb[0].mxu0
      %v557 = vadd.f32 %v463, %v556
      %v558 = vpop.f32.mrb[0].mxu0
      %559 = vmatprep.mubr.f32.mxu0 0.0
      %v560 = vand.u32 %v266, 4294901760
      %v561 = vsub.f32 %v266, %v560
      %562 = vmatmul.mubr.f32.gmra.mrb[0].mxu0 %v561
      %v563 = vpop.f32.mrb[0].mxu0
      %v564 = vadd.f32 %v469, %v563
      %v565 = vpop.f32.mrb[0].mxu0
      %566 = vdwg.mxu0
      %567 = vmatprep.subr.mxu0 0.0
      %v568 = vand.u32 %v270, 4294901760
      %569 = vmatpush1.msra.mxu0 %v568
      %570 = vmatprep.subr.mxu0 0.0
      %571 = vmatpush1.msra.mxu0 0.0
      %572 = vmatprep.subr.mxu0 0.0
      %573 = vmatpush1.msra.mxu0 0.0
      %574 = vmatprep.subr.mxu0 0.0
      %575 = vmatpush1.msra.mxu0 0.0
      %576 = vmatprep.subr.mxu0 0.0
      %577 = vmatpush1.msra.mxu0 0.0
      %578 = vmatprep.subr.mxu0 0.0
      %579 = vmatpush1.msra.mxu0 0.0
      %580 = vmatprep.subr.mxu0 0.0
      %581 = vmatpush1.msra.mxu0 0.0
      %582 = vmatprep.subr.mxu0 0.0
      %583 = vmatpush1.msra.mxu0 0.0
      %584 = vmatprep.subr.mxu0 0.0
      %585 = vmatpush1.msra.mxu0 0.0
      %586 = vmatprep.subr.mxu0 0.0
      %587 = vmatpush1.msra.mxu0 0.0
      %588 = vmatprep.subr.mxu0 0.0
      %589 = vmatpush1.msra.mxu0 0.0
      %590 = vmatprep.subr.mxu0 0.0
      %591 = vmatpush1.msra.mxu0 0.0
      %592 = vmatprep.subr.mxu0 0.0
      %593 = vmatpush1.msra.mxu0 0.0
      %594 = vmatprep.subr.mxu0 0.0
      %595 = vmatpush1.msra.mxu0 0.0
      %596 = vmatprep.subr.mxu0 0.0
      %597 = vmatpush1.msra.mxu0 0.0
      %598 = vmatprep.subr.mxu0 0.0
      %599 = vmatpush1.msra.mxu0 0.0
      %600 = vmatprep.subr.mxu0 0.0
      %601 = vmatpush1.msra.mxu0 0.0
      %602 = vmatprep.subr.mxu0 0.0
      %603 = vmatpush1.msra.mxu0 0.0
      %604 = vmatprep.subr.mxu0 0.0
      %605 = vmatpush1.msra.mxu0 0.0
      %606 = vmatprep.subr.mxu0 0.0
      %607 = vmatpush1.msra.mxu0 0.0
      %608 = vmatprep.subr.mxu0 0.0
      %609 = vmatpush1.msra.mxu0 0.0
      %610 = vmatprep.subr.mxu0 0.0
      %611 = vmatpush1.msra.mxu0 0.0
      %612 = vmatprep.subr.mxu0 0.0
      %613 = vmatpush1.msra.mxu0 0.0
      %614 = vmatprep.subr.mxu0 0.0
      %615 = vmatpush1.msra.mxu0 0.0
      %616 = vmatprep.subr.mxu0 0.0
      %617 = vmatpush1.msra.mxu0 0.0
      %618 = vmatprep.subr.mxu0 0.0
      %619 = vmatpush1.msra.mxu0 0.0
      %620 = vmatprep.subr.mxu0 0.0
      %621 = vmatpush1.msra.mxu0 0.0
      %622 = vmatprep.subr.mxu0 0.0
      %623 = vmatpush1.msra.mxu0 0.0
      %624 = vmatprep.subr.mxu0 0.0
      %625 = vmatpush1.msra.mxu0 0.0
      %626 = vmatprep.subr.mxu0 0.0
      %627 = vmatpush1.msra.mxu0 0.0
      %628 = vmatprep.subr.mxu0 0.0
      %629 = vmatpush1.msra.mxu0 0.0
      %630 = vmatprep.subr.mxu0 0.0
      %631 = vmatpush1.msra.mxu0 0.0
      %632 = vmatprep.mubr.f32.mxu0 0.0
      %v633 = vand.u32 %v257, 4294901760
      %v634 = vsub.f32 %v257, %v633
      %v635 = vand.u32 %v634, 4294901760
      %636 = vmatmul.mubr.f32.gmra.mrb[0].mxu0 %v635
      %v637 = vpop.f32.mrb[0].mxu0
      %v638 = vadd.f32 %v543, %v637
      %v639 = vpop.f32.mrb[0].mxu0
      %640 = vmatprep.mubr.f32.mxu0 0.0
      %v641 = vand.u32 %v260, 4294901760
      %v642 = vsub.f32 %v260, %v641
      %v643 = vand.u32 %v642, 4294901760
      %644 = vmatmul.mubr.f32.gmra.mrb[0].mxu0 %v643
      %v645 = vpop.f32.mrb[0].mxu0
      %v646 = vadd.f32 %v550, %v645
      %v647 = vpop.f32.mrb[0].mxu0
      %648 = vmatprep.mubr.f32.mxu0 0.0
      %v649 = vand.u32 %v263, 4294901760
      %v650 = vsub.f32 %v263, %v649
      %v651 = vand.u32 %v650, 4294901760
      %652 = vmatmul.mubr.f32.gmra.mrb[0].mxu0 %v651
      %v653 = vpop.f32.mrb[0].mxu0
      %v654 = vadd.f32 %v557, %v653
      %v655 = vpop.f32.mrb[0].mxu0
      %656 = vmatprep.mubr.f32.mxu0 0.0
      %v657 = vand.u32 %v266, 4294901760
      %v658 = vsub.f32 %v266, %v657
      %v659 = vand.u32 %v658, 4294901760
      %660 = vmatmul.mubr.f32.gmra.mrb[0].mxu0 %v659
      %v661 = vpop.f32.mrb[0].mxu0
      %v662 = vadd.f32 %v564, %v661
      %v663 = vpop.f32.mrb[0].mxu0
      %664 = vdwg.mxu0
      %665 = vmatprep.subr.mxu0 0.0
      %v666 = vand.u32 %v270, 4294901760
      %v667 = vsub.f32 %v270, %v666
      %v668 = vand.u32 %v667, 4294901760
      %669 = vmatpush1.msra.mxu0 %v668
      %670 = vmatprep.subr.mxu0 0.0
      %671 = vmatpush1.msra.mxu0 0.0
      %672 = vmatprep.subr.mxu0 0.0
      %673 = vmatpush1.msra.mxu0 0.0
      %674 = vmatprep.subr.mxu0 0.0
      %675 = vmatpush1.msra.mxu0 0.0
      %676 = vmatprep.subr.mxu0 0.0
      %677 = vmatpush1.msra.mxu0 0.0
      %678 = vmatprep.subr.mxu0 0.0
      %679 = vmatpush1.msra.mxu0 0.0
      %680 = vmatprep.subr.mxu0 0.0
      %681 = vmatpush1.msra.mxu0 0.0
      %682 = vmatprep.subr.mxu0 0.0
      %683 = vmatpush1.msra.mxu0 0.0
      %684 = vmatprep.subr.mxu0 0.0
      %685 = vmatpush1.msra.mxu0 0.0
      %686 = vmatprep.subr.mxu0 0.0
      %687 = vmatpush1.msra.mxu0 0.0
      %688 = vmatprep.subr.mxu0 0.0
      %689 = vmatpush1.msra.mxu0 0.0
      %690 = vmatprep.subr.mxu0 0.0
      %691 = vmatpush1.msra.mxu0 0.0
      %692 = vmatprep.subr.mxu0 0.0
      %693 = vmatpush1.msra.mxu0 0.0
      %694 = vmatprep.subr.mxu0 0.0
      %695 = vmatpush1.msra.mxu0 0.0
      %696 = vmatprep.subr.mxu0 0.0
      %697 = vmatpush1.msra.mxu0 0.0
      %698 = vmatprep.subr.mxu0 0.0
      %699 = vmatpush1.msra.mxu0 0.0
      %700 = vmatprep.subr.mxu0 0.0
      %701 = vmatpush1.msra.mxu0 0.0
      %702 = vmatprep.subr.mxu0 0.0
      %703 = vmatpush1.msra.mxu0 0.0
      %704 = vmatprep.subr.mxu0 0.0
      %705 = vmatpush1.msra.mxu0 0.0
      %706 = vmatprep.subr.mxu0 0.0
      %707 = vmatpush1.msra.mxu0 0.0
      %708 = vmatprep.subr.mxu0 0.0
      %709 = vmatpush1.msra.mxu0 0.0
      %710 = vmatprep.subr.mxu0 0.0
      %711 = vmatpush1.msra.mxu0 0.0
      %712 = vmatprep.subr.mxu0 0.0
      %713 = vmatpush1.msra.mxu0 0.0
      %714 = vmatprep.subr.mxu0 0.0
      %715 = vmatpush1.msra.mxu0 0.0
      %716 = vmatprep.subr.mxu0 0.0
      %717 = vmatpush1.msra.mxu0 0.0
      %718 = vmatprep.subr.mxu0 0.0
      %719 = vmatpush1.msra.mxu0 0.0
      %720 = vmatprep.subr.mxu0 0.0
      %721 = vmatpush1.msra.mxu0 0.0
      %722 = vmatprep.subr.mxu0 0.0
      %723 = vmatpush1.msra.mxu0 0.0
      %724 = vmatprep.subr.mxu0 0.0
      %725 = vmatpush1.msra.mxu0 0.0
      %726 = vmatprep.subr.mxu0 0.0
      %727 = vmatpush1.msra.mxu0 0.0
      %728 = vmatprep.subr.mxu0 0.0
      %729 = vmatpush1.msra.mxu0 0.0
      %730 = vmatprep.subr.mxu0 0.0
      %731 = vmatpush1.msra.mxu0 0.0
      %732 = vmatprep.mubr.f32.mxu0 0.0
      %v733 = vand.u32 %v257, 4294901760
      %734 = vmatmul.mubr.f32.gmra.mrb[0].mxu0 %v733
      %v735 = vpop.f32.mrb[0].mxu0
      %v736 = vadd.f32 %v638, %v735
      %v737 = vpop.f32.mrb[0].mxu0
      %738 = vmatprep.mubr.f32.mxu0 0.0
      %v739 = vand.u32 %v260, 4294901760
      %740 = vmatmul.mubr.f32.gmra.mrb[0].mxu0 %v739
      %v741 = vpop.f32.mrb[0].mxu0
      %v742 = vadd.f32 %v646, %v741
      %v743 = vpop.f32.mrb[0].mxu0
      %744 = vmatprep.mubr.f32.mxu0 0.0
      %v745 = vand.u32 %v263, 4294901760
      %746 = vmatmul.mubr.f32.gmra.mrb[0].mxu0 %v745
      %v747 = vpop.f32.mrb[0].mxu0
      %v748 = vadd.f32 %v654, %v747
      %v749 = vpop.f32.mrb[0].mxu0
      %750 = vmatprep.mubr.f32.mxu0 0.0
      %v751 = vand.u32 %v266, 4294901760
      %752 = vmatmul.mubr.f32.gmra.mrb[0].mxu0 %v751
      %v753 = vpop.f32.mrb[0].mxu0
      %v754 = vadd.f32 %v662, %v753
      %v755 = vpop.f32.mrb[0].mxu0
      %756 = vdwg.mxu0
      %757 = vmatprep.subr.mxu0 0.0
      %v758 = vand.u32 %v270, 4294901760
      %759 = vmatpush1.msra.mxu0 %v758
      %760 = vmatprep.subr.mxu0 0.0
      %761 = vmatpush1.msra.mxu0 0.0
      %762 = vmatprep.subr.mxu0 0.0
      %763 = vmatpush1.msra.mxu0 0.0
      %764 = vmatprep.subr.mxu0 0.0
      %765 = vmatpush1.msra.mxu0 0.0
      %766 = vmatprep.subr.mxu0 0.0
      %767 = vmatpush1.msra.mxu0 0.0
      %768 = vmatprep.subr.mxu0 0.0
      %769 = vmatpush1.msra.mxu0 0.0
      %770 = vmatprep.subr.mxu0 0.0
      %771 = vmatpush1.msra.mxu0 0.0
      %772 = vmatprep.subr.mxu0 0.0
      %773 = vmatpush1.msra.mxu0 0.0
      %774 = vmatprep.subr.mxu0 0.0
      %775 = vmatpush1.msra.mxu0 0.0
      %776 = vmatprep.subr.mxu0 0.0
      %777 = vmatpush1.msra.mxu0 0.0
      %778 = vmatprep.subr.mxu0 0.0
      %779 = vmatpush1.msra.mxu0 0.0
      %780 = vmatprep.subr.mxu0 0.0
      %781 = vmatpush1.msra.mxu0 0.0
      %782 = vmatprep.subr.mxu0 0.0
      %783 = vmatpush1.msra.mxu0 0.0
      %784 = vmatprep.subr.mxu0 0.0
      %785 = vmatpush1.msra.mxu0 0.0
      %786 = vmatprep.subr.mxu0 0.0
      %787 = vmatpush1.msra.mxu0 0.0
      %788 = vmatprep.subr.mxu0 0.0
      %789 = vmatpush1.msra.mxu0 0.0
      %790 = vmatprep.subr.mxu0 0.0
      %791 = vmatpush1.msra.mxu0 0.0
      %792 = vmatprep.subr.mxu0 0.0
      %793 = vmatpush1.msra.mxu0 0.0
      %794 = vmatprep.subr.mxu0 0.0
      %795 = vmatpush1.msra.mxu0 0.0
      %796 = vmatprep.subr.mxu0 0.0
      %797 = vmatpush1.msra.mxu0 0.0
      %798 = vmatprep.subr.mxu0 0.0
      %799 = vmatpush1.msra.mxu0 0.0
      %800 = vmatprep.subr.mxu0 0.0
      %801 = vmatpush1.msra.mxu0 0.0
      %802 = vmatprep.subr.mxu0 0.0
      %803 = vmatpush1.msra.mxu0 0.0
      %804 = vmatprep.subr.mxu0 0.0
      %805 = vmatpush1.msra.mxu0 0.0
      %806 = vmatprep.subr.mxu0 0.0
      %807 = vmatpush1.msra.mxu0 0.0
      %808 = vmatprep.subr.mxu0 0.0
      %809 = vmatpush1.msra.mxu0 0.0
      %810 = vmatprep.subr.mxu0 0.0
      %811 = vmatpush1.msra.mxu0 0.0
      %812 = vmatprep.subr.mxu0 0.0
      %813 = vmatpush1.msra.mxu0 0.0
      %814 = vmatprep.subr.mxu0 0.0
      %815 = vmatpush1.msra.mxu0 0.0
      %816 = vmatprep.subr.mxu0 0.0
      %817 = vmatpush1.msra.mxu0 0.0
      %818 = vmatprep.subr.mxu0 0.0
      %819 = vmatpush1.msra.mxu0 0.0
      %820 = vmatprep.subr.mxu0 0.0
      %821 = vmatpush1.msra.mxu0 0.0
      %822 = vmatprep.mubr.f32.mxu0 0.0
      %v823 = vand.u32 %v257, 4294901760
      %824 = vmatmul.mubr.f32.gmra.mrb[0].mxu0 %v823
      %v825 = vpop.f32.mrb[0].mxu0
      %v826 = vadd.f32 %v736, %v825
      %v827 = vpop.f32.mrb[0].mxu0
      %828 = vmatprep.mubr.f32.mxu0 0.0
      %v829 = vand.u32 %v260, 4294901760
      %830 = vmatmul.mubr.f32.gmra.mrb[0].mxu0 %v829
      %v831 = vpop.f32.mrb[0].mxu0
      %v832 = vadd.f32 %v742, %v831
      %v833 = vpop.f32.mrb[0].mxu0
      %834 = vmatprep.mubr.f32.mxu0 0.0
      %v835 = vand.u32 %v263, 4294901760
      %836 = vmatmul.mubr.f32.gmra.mrb[0].mxu0 %v835
      %v837 = vpop.f32.mrb[0].mxu0
      %v838 = vadd.f32 %v748, %v837
      %v839 = vpop.f32.mrb[0].mxu0
      %840 = vmatprep.mubr.f32.mxu0 0.0
      %v841 = vand.u32 %v266, 4294901760
      %842 = vmatmul.mubr.f32.gmra.mrb[0].mxu0 %v841
      %v843 = vpop.f32.mrb[0].mxu0
      %v844 = vadd.f32 %v754, %v843
      %v845 = vpop.f32.mrb[0].mxu0
      %846 = vdwg.mxu0
      %vm847 = vcmp.gt.f32.partialorder %v826, 0.0
      %vm848 = vcmp.gt.f32.partialorder %v832, 0.0
      %vm849 = vcmp.gt.f32.partialorder %v838, 0.0
      %vm850 = vcmp.gt.f32.partialorder %v844, 0.0
      %851 = vset.pattern.permute.xlu0 1
      %852 = vperm.xlu0 %851, %v227
      %v853 = vpop.permute.xlu0 %852
      %855 = vset.pattern.permute.xlu0 1
      %856 = vperm.xlu0 %855, %v228
      %v857 = vpop.permute.xlu0 %856
      %859 = vset.pattern.permute.xlu0 1
      %860 = vperm.xlu0 %859, %v229
      %v861 = vpop.permute.xlu0 %860
      %863 = vset.pattern.permute.xlu0 1
      %864 = vperm.xlu0 %863, %v230
      %v865 = vpop.permute.xlu0 %864
      %v867 = vmul.f32 %v853, %v826
      %v868 = vmul.f32 %v857, %v832
      %v869 = vmul.f32 %v861, %v838
      %v870 = vmul.f32 %v865, %v844
      %v871 = vsel %vm847, %v826, %v867
      %v872 = vsel %vm848, %v832, %v868
      %v873 = vsel %vm849, %v838, %v869
      %v874 = vsel %vm850, %v844, %v870
      %v875 = vld [vmem:[%s2] sm:$0xff]
      %v876 = vld [vmem:[%s2 + $0x8] sm:$0xff]
      %v877 = vld [vmem:[%s2 + $0x10] sm:$0xff]
      %v878 = vld [vmem:[%s2 + $0x18] sm:$0xff]
      %879 = vset.pattern.permute.xlu0 2
      %880 = vperm.xlu0 %879, %v227
      %v881 = vpop.permute.xlu0 %880
      %883 = vset.pattern.permute.xlu0 2
      %884 = vperm.xlu0 %883, %v228
      %v885 = vpop.permute.xlu0 %884
      %887 = vset.pattern.permute.xlu0 2
      %888 = vperm.xlu0 %887, %v229
      %v889 = vpop.permute.xlu0 %888
      %891 = vset.pattern.permute.xlu0 2
      %892 = vperm.xlu0 %891, %v230
      %v893 = vpop.permute.xlu0 %892
      %vm895 = vcmask 261120
      %v897 = vsel %vm895, %v875, 0
      %v900 = vsel %vm895, %v876, 0
      %v903 = vsel %vm895, %v877, 0
      %v906 = vsel %vm895, %v878, 0
      %908 = vmatprep.subr.mxu0 0.0
      %v909 = vand.u32 %v871, 4294901760
      %910 = vmatpush1.msra.mxu0 %v909
      %911 = vmatprep.subr.mxu0 0.0
      %v912 = vand.u32 %v872, 4294901760
      %913 = vmatpush1.msra.mxu0 %v912
      %914 = vmatprep.subr.mxu0 0.0
      %v915 = vand.u32 %v873, 4294901760
      %916 = vmatpush1.msra.mxu0 %v915
      %917 = vmatprep.subr.mxu0 0.0
      %v918 = vand.u32 %v874, 4294901760
      %919 = vmatpush1.msra.mxu0 %v918
      %920 = vmatprep.subr.mxu0 0.0
      %921 = vmatpush1.msra.mxu0 0.0
      %922 = vmatprep.subr.mxu0 0.0
      %923 = vmatpush1.msra.mxu0 0.0
      %924 = vmatprep.subr.mxu0 0.0
      %925 = vmatpush1.msra.mxu0 0.0
      %926 = vmatprep.subr.mxu0 0.0
      %927 = vmatpush1.msra.mxu0 0.0
      %928 = vmatprep.subr.mxu0 0.0
      %929 = vmatpush1.msra.mxu0 0.0
      %930 = vmatprep.subr.mxu0 0.0
      %931 = vmatpush1.msra.mxu0 0.0
      %932 = vmatprep.subr.mxu0 0.0
      %933 = vmatpush1.msra.mxu0 0.0
      %934 = vmatprep.subr.mxu0 0.0
      %935 = vmatpush1.msra.mxu0 0.0
      %936 = vmatprep.subr.mxu0 0.0
      %937 = vmatpush1.msra.mxu0 0.0
      %938 = vmatprep.subr.mxu0 0.0
      %939 = vmatpush1.msra.mxu0 0.0
      %940 = vmatprep.subr.mxu0 0.0
      %941 = vmatpush1.msra.mxu0 0.0
      %942 = vmatprep.subr.mxu0 0.0
      %943 = vmatpush1.msra.mxu0 0.0
      %944 = vmatprep.subr.mxu0 0.0
      %945 = vmatpush1.msra.mxu0 0.0
      %946 = vmatprep.subr.mxu0 0.0
      %947 = vmatpush1.msra.mxu0 0.0
      %948 = vmatprep.subr.mxu0 0.0
      %949 = vmatpush1.msra.mxu0 0.0
      %950 = vmatprep.subr.mxu0 0.0
      %951 = vmatpush1.msra.mxu0 0.0
      %952 = vmatprep.subr.mxu0 0.0
      %953 = vmatpush1.msra.mxu0 0.0
      %954 = vmatprep.subr.mxu0 0.0
      %955 = vmatpush1.msra.mxu0 0.0
      %956 = vmatprep.subr.mxu0 0.0
      %957 = vmatpush1.msra.mxu0 0.0
      %958 = vmatprep.subr.mxu0 0.0
      %959 = vmatpush1.msra.mxu0 0.0
      %960 = vmatprep.subr.mxu0 0.0
      %961 = vmatpush1.msra.mxu0 0.0
      %962 = vmatprep.subr.mxu0 0.0
      %963 = vmatpush1.msra.mxu0 0.0
      %964 = vmatprep.subr.mxu0 0.0
      %965 = vmatpush1.msra.mxu0 0.0
      %966 = vmatprep.subr.mxu0 0.0
      %967 = vmatpush1.msra.mxu0 0.0
      %968 = vmatprep.subr.mxu0 0.0
      %969 = vmatpush1.msra.mxu0 0.0
      %970 = vmatprep.subr.mxu0 0.0
      %971 = vmatpush1.msra.mxu0 0.0
      %972 = vmatprep.subr.mxu0 0.0
      %973 = vmatpush1.msra.mxu0 0.0
      %974 = vmatprep.subr.mxu0 0.0
      %975 = vmatpush1.msra.mxu0 0.0
      %976 = vmatprep.mubr.f32.mxu0 0.0
      %v977 = vand.u32 %v897, 4294901760
      %v978 = vsub.f32 %v897, %v977
      %v979 = vand.u32 %v978, 4294901760
      %v980 = vsub.f32 %v978, %v979
      %v981 = vand.u32 %v980, 4294901760
      %982 = vmatmul.mubr.f32.gmra.mrb[0].mxu0 %v981
      %v983 = vpop.f32.mrb[0].mxu0
      %v984 = vadd.f32 %v881, %v983
      %v985 = vpop.f32.mrb[0].mxu0
      %986 = vmatprep.mubr.f32.mxu0 0.0
      %v987 = vand.u32 %v900, 4294901760
      %v988 = vsub.f32 %v900, %v987
      %v989 = vand.u32 %v988, 4294901760
      %v990 = vsub.f32 %v988, %v989
      %v991 = vand.u32 %v990, 4294901760
      %992 = vmatmul.mubr.f32.gmra.mrb[0].mxu0 %v991
      %v993 = vpop.f32.mrb[0].mxu0
      %v994 = vadd.f32 %v885, %v993
      %v995 = vpop.f32.mrb[0].mxu0
      %996 = vmatprep.mubr.f32.mxu0 0.0
      %v997 = vand.u32 %v903, 4294901760
      %v998 = vsub.f32 %v903, %v997
      %v999 = vand.u32 %v998, 4294901760
      %v1000 = vsub.f32 %v998, %v999
      %v1001 = vand.u32 %v1000, 4294901760
      %1002 = vmatmul.mubr.f32.gmra.mrb[0].mxu0 %v1001
      %v1003 = vpop.f32.mrb[0].mxu0
      %v1004 = vadd.f32 %v889, %v1003
      %v1005 = vpop.f32.mrb[0].mxu0
      %1006 = vmatprep.mubr.f32.mxu0 0.0
      %v1007 = vand.u32 %v906, 4294901760
      %v1008 = vsub.f32 %v906, %v1007
      %v1009 = vand.u32 %v1008, 4294901760
      %v1010 = vsub.f32 %v1008, %v1009
      %v1011 = vand.u32 %v1010, 4294901760
      %1012 = vmatmul.mubr.f32.gmra.mrb[0].mxu0 %v1011
      %v1013 = vpop.f32.mrb[0].mxu0
      %v1014 = vadd.f32 %v893, %v1013
      %v1015 = vpop.f32.mrb[0].mxu0
      %1016 = vdwg.mxu0
      %1017 = vmatprep.subr.mxu0 0.0
      %v1018 = vand.u32 %v871, 4294901760
      %v1019 = vsub.f32 %v871, %v1018
      %v1020 = vand.u32 %v1019, 4294901760
      %v1021 = vsub.f32 %v1019, %v1020
      %v1022 = vand.u32 %v1021, 4294901760
      %1023 = vmatpush1.msra.mxu0 %v1022
      %1024 = vmatprep.subr.mxu0 0.0
      %v1025 = vand.u32 %v872, 4294901760
      %v1026 = vsub.f32 %v872, %v1025
      %v1027 = vand.u32 %v1026, 4294901760
      %v1028 = vsub.f32 %v1026, %v1027
      %v1029 = vand.u32 %v1028, 4294901760
      %1030 = vmatpush1.msra.mxu0 %v1029
      %1031 = vmatprep.subr.mxu0 0.0
      %v1032 = vand.u32 %v873, 4294901760
      %v1033 = vsub.f32 %v873, %v1032
      %v1034 = vand.u32 %v1033, 4294901760
      %v1035 = vsub.f32 %v1033, %v1034
      %v1036 = vand.u32 %v1035, 4294901760
      %1037 = vmatpush1.msra.mxu0 %v1036
      %1038 = vmatprep.subr.mxu0 0.0
      %v1039 = vand.u32 %v874, 4294901760
      %v1040 = vsub.f32 %v874, %v1039
      %v1041 = vand.u32 %v1040, 4294901760
      %v1042 = vsub.f32 %v1040, %v1041
      %v1043 = vand.u32 %v1042, 4294901760
      %1044 = vmatpush1.msra.mxu0 %v1043
      %1045 = vmatprep.subr.mxu0 0.0
      %1046 = vmatpush1.msra.mxu0 0.0
      %1047 = vmatprep.subr.mxu0 0.0
      %1048 = vmatpush1.msra.mxu0 0.0
      %1049 = vmatprep.subr.mxu0 0.0
      %1050 = vmatpush1.msra.mxu0 0.0
      %1051 = vmatprep.subr.mxu0 0.0
      %1052 = vmatpush1.msra.mxu0 0.0
      %1053 = vmatprep.subr.mxu0 0.0
      %1054 = vmatpush1.msra.mxu0 0.0
      %1055 = vmatprep.subr.mxu0 0.0
      %1056 = vmatpush1.msra.mxu0 0.0
      %1057 = vmatprep.subr.mxu0 0.0
      %1058 = vmatpush1.msra.mxu0 0.0
      %1059 = vmatprep.subr.mxu0 0.0
      %1060 = vmatpush1.msra.mxu0 0.0
      %1061 = vmatprep.subr.mxu0 0.0
      %1062 = vmatpush1.msra.mxu0 0.0
      %1063 = vmatprep.subr.mxu0 0.0
      %1064 = vmatpush1.msra.mxu0 0.0
      %1065 = vmatprep.subr.mxu0 0.0
      %1066 = vmatpush1.msra.mxu0 0.0
      %1067 = vmatprep.subr.mxu0 0.0
      %1068 = vmatpush1.msra.mxu0 0.0
      %1069 = vmatprep.subr.mxu0 0.0
      %1070 = vmatpush1.msra.mxu0 0.0
      %1071 = vmatprep.subr.mxu0 0.0
      %1072 = vmatpush1.msra.mxu0 0.0
      %1073 = vmatprep.subr.mxu0 0.0
      %1074 = vmatpush1.msra.mxu0 0.0
      %1075 = vmatprep.subr.mxu0 0.0
      %1076 = vmatpush1.msra.mxu0 0.0
      %1077 = vmatprep.subr.mxu0 0.0
      %1078 = vmatpush1.msra.mxu0 0.0
      %1079 = vmatprep.subr.mxu0 0.0
      %1080 = vmatpush1.msra.mxu0 0.0
      %1081 = vmatprep.subr.mxu0 0.0
      %1082 = vmatpush1.msra.mxu0 0.0
      %1083 = vmatprep.subr.mxu0 0.0
      %1084 = vmatpush1.msra.mxu0 0.0
      %1085 = vmatprep.subr.mxu0 0.0
      %1086 = vmatpush1.msra.mxu0 0.0
      %1087 = vmatprep.subr.mxu0 0.0
      %1088 = vmatpush1.msra.mxu0 0.0
      %1089 = vmatprep.subr.mxu0 0.0
      %1090 = vmatpush1.msra.mxu0 0.0
      %1091 = vmatprep.subr.mxu0 0.0
      %1092 = vmatpush1.msra.mxu0 0.0
      %1093 = vmatprep.subr.mxu0 0.0
      %1094 = vmatpush1.msra.mxu0 0.0
      %1095 = vmatprep.subr.mxu0 0.0
      %1096 = vmatpush1.msra.mxu0 0.0
      %1097 = vmatprep.subr.mxu0 0.0
      %1098 = vmatpush1.msra.mxu0 0.0
      %1099 = vmatprep.subr.mxu0 0.0
      %1100 = vmatpush1.msra.mxu0 0.0
      %1101 = vmatprep.mubr.f32.mxu0 0.0
      %v1102 = vand.u32 %v897, 4294901760
      %1103 = vmatmul.mubr.f32.gmra.mrb[0].mxu0 %v1102
      %v1104 = vpop.f32.mrb[0].mxu0
      %v1105 = vadd.f32 %v984, %v1104
      %v1106 = vpop.f32.mrb[0].mxu0
      %1107 = vmatprep.mubr.f32.mxu0 0.0
      %v1108 = vand.u32 %v900, 4294901760
      %1109 = vmatmul.mubr.f32.gmra.mrb[0].mxu0 %v1108
      %v1110 = vpop.f32.mrb[0].mxu0
      %v1111 = vadd.f32 %v994, %v1110
      %v1112 = vpop.f32.mrb[0].mxu0
      %1113 = vmatprep.mubr.f32.mxu0 0.0
      %v1114 = vand.u32 %v903, 4294901760
      %1115 = vmatmul.mubr.f32.gmra.mrb[0].mxu0 %v1114
      %v1116 = vpop.f32.mrb[0].mxu0
      %v1117 = vadd.f32 %v1004, %v1116
      %v1118 = vpop.f32.mrb[0].mxu0
      %1119 = vmatprep.mubr.f32.mxu0 0.0
      %v1120 = vand.u32 %v906, 4294901760
      %1121 = vmatmul.mubr.f32.gmra.mrb[0].mxu0 %v1120
      %v1122 = vpop.f32.mrb[0].mxu0
      %v1123 = vadd.f32 %v1014, %v1122
      %v1124 = vpop.f32.mrb[0].mxu0
      %1125 = vdwg.mxu0
      %1126 = vmatprep.subr.mxu0 0.0
      %v1127 = vand.u32 %v871, 4294901760
      %v1128 = vsub.f32 %v871, %v1127
      %1129 = vmatpush1.msra.mxu0 %v1128
      %1130 = vmatprep.subr.mxu0 0.0
      %v1131 = vand.u32 %v872, 4294901760
      %v1132 = vsub.f32 %v872, %v1131
      %1133 = vmatpush1.msra.mxu0 %v1132
      %1134 = vmatprep.subr.mxu0 0.0
      %v1135 = vand.u32 %v873, 4294901760
      %v1136 = vsub.f32 %v873, %v1135
      %1137 = vmatpush1.msra.mxu0 %v1136
      %1138 = vmatprep.subr.mxu0 0.0
      %v1139 = vand.u32 %v874, 4294901760
      %v1140 = vsub.f32 %v874, %v1139
      %1141 = vmatpush1.msra.mxu0 %v1140
      %1142 = vmatprep.subr.mxu0 0.0
      %1143 = vmatpush1.msra.mxu0 0.0
      %1144 = vmatprep.subr.mxu0 0.0
      %1145 = vmatpush1.msra.mxu0 0.0
      %1146 = vmatprep.subr.mxu0 0.0
      %1147 = vmatpush1.msra.mxu0 0.0
      %1148 = vmatprep.subr.mxu0 0.0
      %1149 = vmatpush1.msra.mxu0 0.0
      %1150 = vmatprep.subr.mxu0 0.0
      %1151 = vmatpush1.msra.mxu0 0.0
      %1152 = vmatprep.subr.mxu0 0.0
      %1153 = vmatpush1.msra.mxu0 0.0
      %1154 = vmatprep.subr.mxu0 0.0
      %1155 = vmatpush1.msra.mxu0 0.0
      %1156 = vmatprep.subr.mxu0 0.0
      %1157 = vmatpush1.msra.mxu0 0.0
      %1158 = vmatprep.subr.mxu0 0.0
      %1159 = vmatpush1.msra.mxu0 0.0
      %1160 = vmatprep.subr.mxu0 0.0
      %1161 = vmatpush1.msra.mxu0 0.0
      %1162 = vmatprep.subr.mxu0 0.0
      %1163 = vmatpush1.msra.mxu0 0.0
      %1164 = vmatprep.subr.mxu0 0.0
      %1165 = vmatpush1.msra.mxu0 0.0
      %1166 = vmatprep.subr.mxu0 0.0
      %1167 = vmatpush1.msra.mxu0 0.0
      %1168 = vmatprep.subr.mxu0 0.0
      %1169 = vmatpush1.msra.mxu0 0.0
      %1170 = vmatprep.subr.mxu0 0.0
      %1171 = vmatpush1.msra.mxu0 0.0
      %1172 = vmatprep.subr.mxu0 0.0
      %1173 = vmatpush1.msra.mxu0 0.0
      %1174 = vmatprep.subr.mxu0 0.0
      %1175 = vmatpush1.msra.mxu0 0.0
      %1176 = vmatprep.subr.mxu0 0.0
      %1177 = vmatpush1.msra.mxu0 0.0
      %1178 = vmatprep.subr.mxu0 0.0
      %1179 = vmatpush1.msra.mxu0 0.0
      %1180 = vmatprep.subr.mxu0 0.0
      %1181 = vmatpush1.msra.mxu0 0.0
      %1182 = vmatprep.subr.mxu0 0.0
      %1183 = vmatpush1.msra.mxu0 0.0
      %1184 = vmatprep.subr.mxu0 0.0
      %1185 = vmatpush1.msra.mxu0 0.0
      %1186 = vmatprep.subr.mxu0 0.0
      %1187 = vmatpush1.msra.mxu0 0.0
      %1188 = vmatprep.subr.mxu0 0.0
      %1189 = vmatpush1.msra.mxu0 0.0
      %1190 = vmatprep.subr.mxu0 0.0
      %1191 = vmatpush1.msra.mxu0 0.0
      %1192 = vmatprep.subr.mxu0 0.0
      %1193 = vmatpush1.msra.mxu0 0.0
      %1194 = vmatprep.subr.mxu0 0.0
      %1195 = vmatpush1.msra.mxu0 0.0
      %1196 = vmatprep.subr.mxu0 0.0
      %1197 = vmatpush1.msra.mxu0 0.0
      %1198 = vmatprep.mubr.f32.mxu0 0.0
      %v1199 = vand.u32 %v897, 4294901760
      %v1200 = vsub.f32 %v897, %v1199
      %1201 = vmatmul.mubr.f32.gmra.mrb[0].mxu0 %v1200
      %v1202 = vpop.f32.mrb[0].mxu0
      %v1203 = vadd.f32 %v1105, %v1202
      %v1204 = vpop.f32.mrb[0].mxu0
      %1205 = vmatprep.mubr.f32.mxu0 0.0
      %v1206 = vand.u32 %v900, 4294901760
      %v1207 = vsub.f32 %v900, %v1206
      %1208 = vmatmul.mubr.f32.gmra.mrb[0].mxu0 %v1207
      %v1209 = vpop.f32.mrb[0].mxu0
      %v1210 = vadd.f32 %v1111, %v1209
      %v1211 = vpop.f32.mrb[0].mxu0
      %1212 = vmatprep.mubr.f32.mxu0 0.0
      %v1213 = vand.u32 %v903, 4294901760
      %v1214 = vsub.f32 %v903, %v1213
      %1215 = vmatmul.mubr.f32.gmra.mrb[0].mxu0 %v1214
      %v1216 = vpop.f32.mrb[0].mxu0
      %v1217 = vadd.f32 %v1117, %v1216
      %v1218 = vpop.f32.mrb[0].mxu0
      %1219 = vmatprep.mubr.f32.mxu0 0.0
      %v1220 = vand.u32 %v906, 4294901760
      %v1221 = vsub.f32 %v906, %v1220
      %1222 = vmatmul.mubr.f32.gmra.mrb[0].mxu0 %v1221
      %v1223 = vpop.f32.mrb[0].mxu0
      %v1224 = vadd.f32 %v1123, %v1223
      %v1225 = vpop.f32.mrb[0].mxu0
      %1226 = vdwg.mxu0
      %1227 = vmatprep.subr.mxu0 0.0
      %v1228 = vand.u32 %v871, 4294901760
      %1229 = vmatpush1.msra.mxu0 %v1228
      %1230 = vmatprep.subr.mxu0 0.0
      %v1231 = vand.u32 %v872, 4294901760
      %1232 = vmatpush1.msra.mxu0 %v1231
      %1233 = vmatprep.subr.mxu0 0.0
      %v1234 = vand.u32 %v873, 4294901760
      %1235 = vmatpush1.msra.mxu0 %v1234
      %1236 = vmatprep.subr.mxu0 0.0
      %v1237 = vand.u32 %v874, 4294901760
      %1238 = vmatpush1.msra.mxu0 %v1237
      %1239 = vmatprep.subr.mxu0 0.0
      %1240 = vmatpush1.msra.mxu0 0.0
      %1241 = vmatprep.subr.mxu0 0.0
      %1242 = vmatpush1.msra.mxu0 0.0
      %1243 = vmatprep.subr.mxu0 0.0
      %1244 = vmatpush1.msra.mxu0 0.0
      %1245 = vmatprep.subr.mxu0 0.0
      %1246 = vmatpush1.msra.mxu0 0.0
      %1247 = vmatprep.subr.mxu0 0.0
      %1248 = vmatpush1.msra.mxu0 0.0
      %1249 = vmatprep.subr.mxu0 0.0
      %1250 = vmatpush1.msra.mxu0 0.0
      %1251 = vmatprep.subr.mxu0 0.0
      %1252 = vmatpush1.msra.mxu0 0.0
      %1253 = vmatprep.subr.mxu0 0.0
      %1254 = vmatpush1.msra.mxu0 0.0
      %1255 = vmatprep.subr.mxu0 0.0
      %1256 = vmatpush1.msra.mxu0 0.0
      %1257 = vmatprep.subr.mxu0 0.0
      %1258 = vmatpush1.msra.mxu0 0.0
      %1259 = vmatprep.subr.mxu0 0.0
      %1260 = vmatpush1.msra.mxu0 0.0
      %1261 = vmatprep.subr.mxu0 0.0
      %1262 = vmatpush1.msra.mxu0 0.0
      %1263 = vmatprep.subr.mxu0 0.0
      %1264 = vmatpush1.msra.mxu0 0.0
      %1265 = vmatprep.subr.mxu0 0.0
      %1266 = vmatpush1.msra.mxu0 0.0
      %1267 = vmatprep.subr.mxu0 0.0
      %1268 = vmatpush1.msra.mxu0 0.0
      %1269 = vmatprep.subr.mxu0 0.0
      %1270 = vmatpush1.msra.mxu0 0.0
      %1271 = vmatprep.subr.mxu0 0.0
      %1272 = vmatpush1.msra.mxu0 0.0
      %1273 = vmatprep.subr.mxu0 0.0
      %1274 = vmatpush1.msra.mxu0 0.0
      %1275 = vmatprep.subr.mxu0 0.0
      %1276 = vmatpush1.msra.mxu0 0.0
      %1277 = vmatprep.subr.mxu0 0.0
      %1278 = vmatpush1.msra.mxu0 0.0
      %1279 = vmatprep.subr.mxu0 0.0
      %1280 = vmatpush1.msra.mxu0 0.0
      %1281 = vmatprep.subr.mxu0 0.0
      %1282 = vmatpush1.msra.mxu0 0.0
      %1283 = vmatprep.subr.mxu0 0.0
      %1284 = vmatpush1.msra.mxu0 0.0
      %1285 = vmatprep.subr.mxu0 0.0
      %1286 = vmatpush1.msra.mxu0 0.0
      %1287 = vmatprep.subr.mxu0 0.0
      %1288 = vmatpush1.msra.mxu0 0.0
      %1289 = vmatprep.subr.mxu0 0.0
      %1290 = vmatpush1.msra.mxu0 0.0
      %1291 = vmatprep.subr.mxu0 0.0
      %1292 = vmatpush1.msra.mxu0 0.0
      %1293 = vmatprep.subr.mxu0 0.0
      %1294 = vmatpush1.msra.mxu0 0.0
      %1295 = vmatprep.mubr.f32.mxu0 0.0
      %v1296 = vand.u32 %v897, 4294901760
      %v1297 = vsub.f32 %v897, %v1296
      %v1298 = vand.u32 %v1297, 4294901760
      %1299 = vmatmul.mubr.f32.gmra.mrb[0].mxu0 %v1298
      %v1300 = vpop.f32.mrb[0].mxu0
      %v1301 = vadd.f32 %v1203, %v1300
      %v1302 = vpop.f32.mrb[0].mxu0
      %1303 = vmatprep.mubr.f32.mxu0 0.0
      %v1304 = vand.u32 %v900, 4294901760
      %v1305 = vsub.f32 %v900, %v1304
      %v1306 = vand.u32 %v1305, 4294901760
      %1307 = vmatmul.mubr.f32.gmra.mrb[0].mxu0 %v1306
      %v1308 = vpop.f32.mrb[0].mxu0
      %v1309 = vadd.f32 %v1210, %v1308
      %v1310 = vpop.f32.mrb[0].mxu0
      %1311 = vmatprep.mubr.f32.mxu0 0.0
      %v1312 = vand.u32 %v903, 4294901760
      %v1313 = vsub.f32 %v903, %v1312
      %v1314 = vand.u32 %v1313, 4294901760
      %1315 = vmatmul.mubr.f32.gmra.mrb[0].mxu0 %v1314
      %v1316 = vpop.f32.mrb[0].mxu0
      %v1317 = vadd.f32 %v1217, %v1316
      %v1318 = vpop.f32.mrb[0].mxu0
      %1319 = vmatprep.mubr.f32.mxu0 0.0
      %v1320 = vand.u32 %v906, 4294901760
      %v1321 = vsub.f32 %v906, %v1320
      %v1322 = vand.u32 %v1321, 4294901760
      %1323 = vmatmul.mubr.f32.gmra.mrb[0].mxu0 %v1322
      %v1324 = vpop.f32.mrb[0].mxu0
      %v1325 = vadd.f32 %v1224, %v1324
      %v1326 = vpop.f32.mrb[0].mxu0
      %1327 = vdwg.mxu0
      %1328 = vmatprep.subr.mxu0 0.0
      %v1329 = vand.u32 %v871, 4294901760
      %v1330 = vsub.f32 %v871, %v1329
      %v1331 = vand.u32 %v1330, 4294901760
      %1332 = vmatpush1.msra.mxu0 %v1331
      %1333 = vmatprep.subr.mxu0 0.0
      %v1334 = vand.u32 %v872, 4294901760
      %v1335 = vsub.f32 %v872, %v1334
      %v1336 = vand.u32 %v1335, 4294901760
      %1337 = vmatpush1.msra.mxu0 %v1336
      %1338 = vmatprep.subr.mxu0 0.0
      %v1339 = vand.u32 %v873, 4294901760
      %v1340 = vsub.f32 %v873, %v1339
      %v1341 = vand.u32 %v1340, 4294901760
      %1342 = vmatpush1.msra.mxu0 %v1341
      %1343 = vmatprep.subr.mxu0 0.0
      %v1344 = vand.u32 %v874, 4294901760
      %v1345 = vsub.f32 %v874, %v1344
      %v1346 = vand.u32 %v1345, 4294901760
      %1347 = vmatpush1.msra.mxu0 %v1346
      %1348 = vmatprep.subr.mxu0 0.0
      %1349 = vmatpush1.msra.mxu0 0.0
      %1350 = vmatprep.subr.mxu0 0.0
      %1351 = vmatpush1.msra.mxu0 0.0
      %1352 = vmatprep.subr.mxu0 0.0
      %1353 = vmatpush1.msra.mxu0 0.0
      %1354 = vmatprep.subr.mxu0 0.0
      %1355 = vmatpush1.msra.mxu0 0.0
      %1356 = vmatprep.subr.mxu0 0.0
      %1357 = vmatpush1.msra.mxu0 0.0
      %1358 = vmatprep.subr.mxu0 0.0
      %1359 = vmatpush1.msra.mxu0 0.0
      %1360 = vmatprep.subr.mxu0 0.0
      %1361 = vmatpush1.msra.mxu0 0.0
      %1362 = vmatprep.subr.mxu0 0.0
      %1363 = vmatpush1.msra.mxu0 0.0
      %1364 = vmatprep.subr.mxu0 0.0
      %1365 = vmatpush1.msra.mxu0 0.0
      %1366 = vmatprep.subr.mxu0 0.0
      %1367 = vmatpush1.msra.mxu0 0.0
      %1368 = vmatprep.subr.mxu0 0.0
      %1369 = vmatpush1.msra.mxu0 0.0
      %1370 = vmatprep.subr.mxu0 0.0
      %1371 = vmatpush1.msra.mxu0 0.0
      %1372 = vmatprep.subr.mxu0 0.0
      %1373 = vmatpush1.msra.mxu0 0.0
      %1374 = vmatprep.subr.mxu0 0.0
      %1375 = vmatpush1.msra.mxu0 0.0
      %1376 = vmatprep.subr.mxu0 0.0
      %1377 = vmatpush1.msra.mxu0 0.0
      %1378 = vmatprep.subr.mxu0 0.0
      %1379 = vmatpush1.msra.mxu0 0.0
      %1380 = vmatprep.subr.mxu0 0.0
      %1381 = vmatpush1.msra.mxu0 0.0
      %1382 = vmatprep.subr.mxu0 0.0
      %1383 = vmatpush1.msra.mxu0 0.0
      %1384 = vmatprep.subr.mxu0 0.0
      %1385 = vmatpush1.msra.mxu0 0.0
      %1386 = vmatprep.subr.mxu0 0.0
      %1387 = vmatpush1.msra.mxu0 0.0
      %1388 = vmatprep.subr.mxu0 0.0
      %1389 = vmatpush1.msra.mxu0 0.0
      %1390 = vmatprep.subr.mxu0 0.0
      %1391 = vmatpush1.msra.mxu0 0.0
      %1392 = vmatprep.subr.mxu0 0.0
      %1393 = vmatpush1.msra.mxu0 0.0
      %1394 = vmatprep.subr.mxu0 0.0
      %1395 = vmatpush1.msra.mxu0 0.0
      %1396 = vmatprep.subr.mxu0 0.0
      %1397 = vmatpush1.msra.mxu0 0.0
      %1398 = vmatprep.subr.mxu0 0.0
      %1399 = vmatpush1.msra.mxu0 0.0
      %1400 = vmatprep.subr.mxu0 0.0
      %1401 = vmatpush1.msra.mxu0 0.0
      %1402 = vmatprep.subr.mxu0 0.0
      %1403 = vmatpush1.msra.mxu0 0.0
      %1404 = vmatprep.mubr.f32.mxu0 0.0
      %v1405 = vand.u32 %v897, 4294901760
      %1406 = vmatmul.mubr.f32.gmra.mrb[0].mxu0 %v1405
      %v1407 = vpop.f32.mrb[0].mxu0
      %v1408 = vadd.f32 %v1301, %v1407
      %v1409 = vpop.f32.mrb[0].mxu0
      %1410 = vmatprep.mubr.f32.mxu0 0.0
      %v1411 = vand.u32 %v900, 4294901760
      %1412 = vmatmul.mubr.f32.gmra.mrb[0].mxu0 %v1411
      %v1413 = vpop.f32.mrb[0].mxu0
      %v1414 = vadd.f32 %v1309, %v1413
      %v1415 = vpop.f32.mrb[0].mxu0
      %1416 = vmatprep.mubr.f32.mxu0 0.0
      %v1417 = vand.u32 %v903, 4294901760
      %1418 = vmatmul.mubr.f32.gmra.mrb[0].mxu0 %v1417
      %v1419 = vpop.f32.mrb[0].mxu0
      %v1420 = vadd.f32 %v1317, %v1419
      %v1421 = vpop.f32.mrb[0].mxu0
      %1422 = vmatprep.mubr.f32.mxu0 0.0
      %v1423 = vand.u32 %v906, 4294901760
      %1424 = vmatmul.mubr.f32.gmra.mrb[0].mxu0 %v1423
      %v1425 = vpop.f32.mrb[0].mxu0
      %v1426 = vadd.f32 %v1325, %v1425
      %v1427 = vpop.f32.mrb[0].mxu0
      %1428 = vdwg.mxu0
      %1429 = vmatprep.subr.mxu0 0.0
      %v1430 = vand.u32 %v871, 4294901760
      %1431 = vmatpush1.msra.mxu0 %v1430
      %1432 = vmatprep.subr.mxu0 0.0
      %v1433 = vand.u32 %v872, 4294901760
      %1434 = vmatpush1.msra.mxu0 %v1433
      %1435 = vmatprep.subr.mxu0 0.0
      %v1436 = vand.u32 %v873, 4294901760
      %1437 = vmatpush1.msra.mxu0 %v1436
      %1438 = vmatprep.subr.mxu0 0.0
      %v1439 = vand.u32 %v874, 4294901760
      %1440 = vmatpush1.msra.mxu0 %v1439
      %1441 = vmatprep.subr.mxu0 0.0
      %1442 = vmatpush1.msra.mxu0 0.0
      %1443 = vmatprep.subr.mxu0 0.0
      %1444 = vmatpush1.msra.mxu0 0.0
      %1445 = vmatprep.subr.mxu0 0.0
      %1446 = vmatpush1.msra.mxu0 0.0
      %1447 = vmatprep.subr.mxu0 0.0
      %1448 = vmatpush1.msra.mxu0 0.0
      %1449 = vmatprep.subr.mxu0 0.0
      %1450 = vmatpush1.msra.mxu0 0.0
      %1451 = vmatprep.subr.mxu0 0.0
      %1452 = vmatpush1.msra.mxu0 0.0
      %1453 = vmatprep.subr.mxu0 0.0
      %1454 = vmatpush1.msra.mxu0 0.0
      %1455 = vmatprep.subr.mxu0 0.0
      %1456 = vmatpush1.msra.mxu0 0.0
      %1457 = vmatprep.subr.mxu0 0.0
      %1458 = vmatpush1.msra.mxu0 0.0
      %1459 = vmatprep.subr.mxu0 0.0
      %1460 = vmatpush1.msra.mxu0 0.0
      %1461 = vmatprep.subr.mxu0 0.0
      %1462 = vmatpush1.msra.mxu0 0.0
      %1463 = vmatprep.subr.mxu0 0.0
      %1464 = vmatpush1.msra.mxu0 0.0
      %1465 = vmatprep.subr.mxu0 0.0
      %1466 = vmatpush1.msra.mxu0 0.0
      %1467 = vmatprep.subr.mxu0 0.0
      %1468 = vmatpush1.msra.mxu0 0.0
      %1469 = vmatprep.subr.mxu0 0.0
      %1470 = vmatpush1.msra.mxu0 0.0
      %1471 = vmatprep.subr.mxu0 0.0
      %1472 = vmatpush1.msra.mxu0 0.0
      %1473 = vmatprep.subr.mxu0 0.0
      %1474 = vmatpush1.msra.mxu0 0.0
      %1475 = vmatprep.subr.mxu0 0.0
      %1476 = vmatpush1.msra.mxu0 0.0
      %1477 = vmatprep.subr.mxu0 0.0
      %1478 = vmatpush1.msra.mxu0 0.0
      %1479 = vmatprep.subr.mxu0 0.0
      %1480 = vmatpush1.msra.mxu0 0.0
      %1481 = vmatprep.subr.mxu0 0.0
      %1482 = vmatpush1.msra.mxu0 0.0
      %1483 = vmatprep.subr.mxu0 0.0
      %1484 = vmatpush1.msra.mxu0 0.0
      %1485 = vmatprep.subr.mxu0 0.0
      %1486 = vmatpush1.msra.mxu0 0.0
      %1487 = vmatprep.subr.mxu0 0.0
      %1488 = vmatpush1.msra.mxu0 0.0
      %1489 = vmatprep.subr.mxu0 0.0
      %1490 = vmatpush1.msra.mxu0 0.0
      %1491 = vmatprep.subr.mxu0 0.0
      %1492 = vmatpush1.msra.mxu0 0.0
      %1493 = vmatprep.subr.mxu0 0.0
      %1494 = vmatpush1.msra.mxu0 0.0
      %1495 = vmatprep.subr.mxu0 0.0
      %1496 = vmatpush1.msra.mxu0 0.0
      %1497 = vmatprep.mubr.f32.mxu0 0.0
      %v1498 = vand.u32 %v897, 4294901760
      %1499 = vmatmul.mubr.f32.gmra.mrb[0].mxu0 %v1498
      %v1500 = vpop.f32.mrb[0].mxu0
      %v1501 = vadd.f32 %v1408, %v1500
      %v1502 = vpop.f32.mrb[0].mxu0
      %1503 = vmatprep.mubr.f32.mxu0 0.0
      %v1504 = vand.u32 %v900, 4294901760
      %1505 = vmatmul.mubr.f32.gmra.mrb[0].mxu0 %v1504
      %v1506 = vpop.f32.mrb[0].mxu0
      %v1507 = vadd.f32 %v1414, %v1506
      %v1508 = vpop.f32.mrb[0].mxu0
      %1509 = vmatprep.mubr.f32.mxu0 0.0
      %v1510 = vand.u32 %v903, 4294901760
      %1511 = vmatmul.mubr.f32.gmra.mrb[0].mxu0 %v1510
      %v1512 = vpop.f32.mrb[0].mxu0
      %v1513 = vadd.f32 %v1420, %v1512
      %v1514 = vpop.f32.mrb[0].mxu0
      %1515 = vmatprep.mubr.f32.mxu0 0.0
      %v1516 = vand.u32 %v906, 4294901760
      %1517 = vmatmul.mubr.f32.gmra.mrb[0].mxu0 %v1516
      %v1518 = vpop.f32.mrb[0].mxu0
      %v1519 = vadd.f32 %v1426, %v1518
      %v1520 = vpop.f32.mrb[0].mxu0
      %1521 = vdwg.mxu0
      %vm1522 = vcmp.gt.f32.partialorder %v1501, 0.0
      %vm1523 = vcmp.gt.f32.partialorder %v1507, 0.0
      %vm1524 = vcmp.gt.f32.partialorder %v1513, 0.0
      %vm1525 = vcmp.gt.f32.partialorder %v1519, 0.0
      %1526 = vset.pattern.permute.xlu0 3
      %1527 = vperm.xlu0 %1526, %v227
      %v1528 = vpop.permute.xlu0 %1527
      %1530 = vset.pattern.permute.xlu0 3
      %1531 = vperm.xlu0 %1530, %v228
      %v1532 = vpop.permute.xlu0 %1531
      %1534 = vset.pattern.permute.xlu0 3
      %1535 = vperm.xlu0 %1534, %v229
      %v1536 = vpop.permute.xlu0 %1535
      %1538 = vset.pattern.permute.xlu0 3
      %1539 = vperm.xlu0 %1538, %v230
      %v1540 = vpop.permute.xlu0 %1539
      %v1542 = vmul.f32 %v1528, %v1501
      %v1543 = vmul.f32 %v1532, %v1507
      %v1544 = vmul.f32 %v1536, %v1513
      %v1545 = vmul.f32 %v1540, %v1519
      %v1546 = vsel %vm1522, %v1501, %v1542
      %v1547 = vsel %vm1523, %v1507, %v1543
      %v1548 = vsel %vm1524, %v1513, %v1544
      %v1549 = vsel %vm1525, %v1519, %v1545
      %vm1550 = vcmask 130048
      %1551 = vst.msk [vmem:[%s225] sm:$0xff] %vm1550, %v1546
      %1552 = vst.msk [vmem:[%s225 + $0x8] sm:$0xff] %vm1550, %v1547
      %1553 = vst.msk [vmem:[%s225 + $0x10] sm:$0xff] %vm1550, %v1548
      %1554 = vst.msk [vmem:[%s225 + $0x18] sm:$0xff] %vm1550, %v1549
      %p1555 = scmp.lt.s32.totalorder %s19, 1
      %s1556 = scalar_select %p1555, %s19, 1
      %p1557 = scmp.lt.s32.totalorder %s20, 0
      %s1558 = scalar_select %p1557, %s20, 0
      %s1559 = smul.addr %s1556, 4
      %s1560 = sadd.s32 %s1558, %s1559
      %s1561 = smul.addr %s1560, 8
      %s1562 = scalar_lea.vmem %s4, %s1561
      // Predicated region
      $region37: #{tpu_custom_call.1} parent=35 // pred_check
        %p1563 = pneg %p138
      $region38: #{tpu_custom_call.1} parent=35 // pred_check_branch
        %1565 = sbr.rel (%p1563) target = $region40
      $region39: #{tpu_custom_call.1} parent=35 // pred_region
        _
      $region40: #{tpu_custom_call.1} parent=35 // pred_fallthru
        _
    $region36: #{tpu_custom_call.1} parent=5 // pred_fallthru
      _
    %p1566 = scmp.le.s32.totalorder 2, %s10
    // Predicated region
    $region41: #{tpu_custom_call.1} parent=5 // pred_check
      %p1567 = pneg %p1566
    $region42: #{tpu_custom_call.1} parent=5 // pred_check_branch
      %1569 = sbr.rel (%p1567) target = $region44
    $region43: #{tpu_custom_call.1} parent=5 // pred_region
      %s1570 = ssub.s32 %s10, 2
      // Predicated region
      $region45: #{tpu_custom_call.1} parent=43 // pred_check
        %p1571 = pneg %p144
      $region46: #{tpu_custom_call.1} parent=43 // pred_check_branch
        %1573 = sbr.rel (%p1571) target = $region48
      $region47: #{tpu_custom_call.1} parent=43 // pred_region
        %p1574 = scmp.lt.s32.totalorder %s21, 1
        %s1575 = scalar_select %p1574, %s21, 1
        %p1576 = scmp.lt.s32.totalorder %s22, 0
        %s1577 = scalar_select %p1576, %s22, 0
        %s1578 = smul.addr %s1575, 4
        %s1579 = sadd.s32 %s1577, %s1578
        %s1580 = smul.addr %s1579, 8
        %s1581 = scalar_lea.vmem %s4, %s1580
      $region48: #{tpu_custom_call.1} parent=43 // pred_fallthru
        _
    $region44: #{tpu_custom_call.1} parent=5 // pred_fallthru
      _
  $region6: #{tpu_custom_call.1} parent=0 // loop_footer
    %s14 = sadd.s32 1, %s10
  $region7: #{tpu_custom_call.1} parent=0 // loop_footer_branch
    %9 = sbr.rel target = $region3
  $region8: #{tpu_custom_call.1} parent=0 // loop_exit
    _

</llo_original>
